<compile_context>
chip_gen: v6e
topology: v6e:2x2x1
jax: 0.10.0
libtpu: 0.0.40
codegen_flags: <defaults>
</compile_context>

<pallas_src>
import jax
import jax.numpy as jnp
import numpy as np
from jax.experimental import pallas as pl
from jax.experimental.pallas import tpu as pltpu

EPS = 1e-5


def _fused_blocks_kernel(x_ref, *refs):
    """x_ref: (H, L) f32 with L = N*W*C (lane axis, channel fastest).

    refs = [wc1_b0, g1_b0, b1_b0, wc2_b0, g2_b0, b2_b0, ... per block ...,
            sel, selT, out_ref, pad_ref]
      wc*_ref : (3, L, L) bf16  per-kh banded (edge-clipped, N-block-diagonal)
      g*/b*   : (1, C)    f32   BN gamma / beta
      sel     : (L, C) f32 ; selT : (C, L) f32  one-hot channel selectors
      out_ref : (H, L)    f32
      pad_ref : (H+2, L)  bf16  shared zero-padded activation scratch
    """
    *blk, sel_ref, selT_ref, out_ref, pad_ref = refs
    nblocks = len(blk) // 6
    H, L = x_ref.shape
    C = blk[1].shape[1]
    NW = L // C
    cnt = jnp.float32(H * NW)            # elements per channel (N*H*W)

    sel = sel_ref[...]                   # (L, C)
    selT = selT_ref[...]                 # (C, L)

    # Zero the H-halo rows once; the W-edge halo is folded into the weights.
    zrow = jnp.zeros((1, L), pad_ref.dtype)
    pad_ref[0:1, :] = zrow
    pad_ref[H + 1:H + 2, :] = zrow

    def set_interior(v):
        # Single bf16 cast per activation, lane-aligned full-width store.
        pad_ref[1:1 + H, :] = v.astype(pad_ref.dtype)

    def conv3x3(wstack_ref):
        # 3 accumulating MXU matmuls (one per kh), K = L, f32 accumulation.
        acc = jnp.dot(pad_ref[0:H, :], wstack_ref[0],
                      preferred_element_type=jnp.float32)
        for kh in (1, 2):
            acc = acc + jnp.dot(pad_ref[kh:kh + H, :], wstack_ref[kh],
                                preferred_element_type=jnp.float32)
        return acc                                               # (H, L) f32

    def bn(acc, gamma, beta, relu):
        # Training-mode BatchNorm, one-pass batch stats; selector matmuls are
        # batched: one reduction matmul, one broadcast-back matmul.
        stats = jnp.concatenate(
            [jnp.sum(acc, axis=0, keepdims=True),
             jnp.sum(acc * acc, axis=0, keepdims=True)], axis=0)  # (2, L)
        ch = jnp.dot(stats, sel, preferred_element_type=jnp.float32)  # (2, C)
        mean = ch[0:1, :] / cnt
        var = ch[1:2, :] / cnt - mean * mean
        scale = gamma * jax.lax.rsqrt(var + EPS)
        shift = beta - mean * scale
        ss = jnp.concatenate([scale, shift], axis=0)                  # (2, C)
        ss_l = jnp.dot(ss, selT, preferred_element_type=jnp.float32)  # (2, L)
        y = acc * ss_l[0:1, :] + ss_l[1:2, :]
        return jnp.maximum(y, 0.0) if relu else y

    x = x_ref[...]                                               # (H, L) f32
    for b in range(nblocks):
        wc1, g1, b1, wc2, g2, b2 = blk[6 * b:6 * b + 6]
        # ---- conv1 -> bn1 -> relu ----
        set_interior(x)
        h = bn(conv3x3(wc1), g1[...], b1[...], relu=True)
        # ---- conv2 -> bn2 ---- (same pad scratch; overwrite is ordered
        # after the conv1 reads by the ref data dependence)
        set_interior(h)
        h2 = bn(conv3x3(wc2), g2[...], b2[...], relu=False)
        # ---- residual add + relu (f32 path) ----
        x = jnp.maximum(h2 + x, 0.0)
    out_ref[...] = x


def _band_weights_per_kh(w_hwio, W, N):
    """HWIO (3,3,Cin,Cout) -> (3, N*W*Cin, N*W*Cout) bf16 banded weights.

    One banded (Toeplitz) matrix per kh tap, built over UNPADDED columns:
    out-of-range kw taps are clipped to zero rows, so no W-edge halo is
    needed.  The N images folded onto the lane axis get a block-diagonal
    structure (no cross-image taps)."""
    KH, KW, Cin, Cout = w_hwio.shape
    w = np.asarray(w_hwio, np.float32)
    eye_n = np.eye(N, dtype=np.float32)
    mats = []
    for kh in range(KH):
        B = np.zeros((W, Cin, W, Cout), np.float32)
        for kw in range(KW):
            for wo in range(W):
                wi = wo + kw - 1                     # stride 1, padding 1
                if 0 <= wi < W:
                    B[wi, :, wo, :] = w[kh, kw]
        mats.append(np.kron(eye_n, B.reshape(W * Cin, W * Cout)))
    return jnp.asarray(np.stack(mats), jnp.bfloat16)


def fused_basic_blocks_forward(x_nhwc, blocks):
    """x_nhwc: (N,H,W,C) f32; blocks: list of (w1,g1,b1,w2,g2,b2) with
    w* in HWIO (3,3,C,C) and g*/b* of shape (C,)."""
    N, H, W, C = x_nhwc.shape
    L = N * W * C
    # Fold (N, W, C) onto the lane axis -> lane-dense (>=128-wide) buffers.
    x2 = jnp.transpose(x_nhwc, (1, 0, 2, 3)).reshape(H, L)

    args = [x2]
    for (w1, g1, b1, w2, g2, b2) in blocks:
        args += [_band_weights_per_kh(w1, W, N), g1.reshape(1, C),
                 b1.reshape(1, C),
                 _band_weights_per_kh(w2, W, N), g2.reshape(1, C),
                 b2.reshape(1, C)]
    sel = np.kron(np.ones((N * W, 1), np.float32), np.eye(C, dtype=np.float32))
    selT = np.kron(np.ones((1, N * W), np.float32), np.eye(C, dtype=np.float32))
    args += [jnp.asarray(sel), jnp.asarray(selT)]

    nblocks = len(blocks)
    # True conv FLOPs (not the inflated banded MACs) for the advisory estimate.
    flops = nblocks * (2 * 2 * (N * H * W) * (9 * C) * C + 12 * N * H * W * C)
    bytes_accessed = (x2.size * 4 + N * H * W * C * 4
                      + nblocks * (2 * 3 * L * L * 2 + 4 * C * 4)
                      + (sel.size + selT.size) * 4)

    vmem = pl.BlockSpec(memory_space=pltpu.MemorySpace.VMEM)
    out2 = pl.pallas_call(
        _fused_blocks_kernel,
        out_shape=jax.ShapeDtypeStruct((H, L), jnp.float32),
        in_specs=[vmem] * len(args),
        out_specs=vmem,
        scratch_shapes=[pltpu.VMEM((H + 2, L), jnp.bfloat16)],
        compiler_params=pltpu.CompilerParams(
            vmem_limit_bytes=16 * 1024 * 1024),
        cost_estimate=pl.CostEstimate(flops=flops,
                                      transcendentals=nblocks * 2 * C,
                                      bytes_accessed=bytes_accessed),
    )(*args)
    return jnp.transpose(out2.reshape(H, N, W, C), (1, 0, 2, 3))


def ref_basic_block(x_nhwc, w1, g1, b1, w2, g2, b2):
    """Pure-JAX f32 reference (NHWC / HWIO), training-mode BatchNorm."""
    dn = ('NHWC', 'HWIO', 'NHWC')

    def bn(y, g, b):
        m = jnp.mean(y, axis=(0, 1, 2), keepdims=True)
        v = jnp.mean((y - m) ** 2, axis=(0, 1, 2), keepdims=True)
        return (y - m) * jax.lax.rsqrt(v + EPS) * g + b

    def conv(a, w):
        return jax.lax.conv_general_dilated(
            a, w, (1, 1), 'SAME', dimension_numbers=dn,
            precision=jax.lax.Precision.HIGHEST)

    o = jnp.maximum(bn(conv(x_nhwc, w1), g1, b1), 0.0)
    o = bn(conv(o, w2), g2, b2)
    return jnp.maximum(o + x_nhwc, 0.0)


if __name__ == "__main__":
    N, C, H, W = 2, 4, 16, 16          # inplanes = planes = 4, stride = 1
    NBLOCKS = 2                        # two fused BasicBlocks per launch
    key = jax.random.PRNGKey(0)
    keys = jax.random.split(key, 1 + 6 * NBLOCKS)

    x_nchw = jax.random.normal(keys[0], (N, C, H, W), jnp.float32)
    # NCHW (PyTorch convention) -> NHWC (kernel layout)
    x_nhwc = jnp.transpose(x_nchw, (0, 2, 3, 1))

    blocks = []
    ki = 1
    for _ in range(NBLOCKS):
        w1 = jax.random.normal(keys[ki], (3, 3, C, C), jnp.float32) * 0.2
        w2 = jax.random.normal(keys[ki + 1], (3, 3, C, C), jnp.float32) * 0.2
        g1 = 1.0 + 0.1 * jax.random.normal(keys[ki + 2], (C,), jnp.float32)
        b1 = 0.1 * jax.random.normal(keys[ki + 3], (C,), jnp.float32)
        g2 = 1.0 + 0.1 * jax.random.normal(keys[ki + 4], (C,), jnp.float32)
        b2 = 0.1 * jax.random.normal(keys[ki + 5], (C,), jnp.float32)
        blocks.append((w1, g1, b1, w2, g2, b2))
        ki += 6

    out = jax.block_until_ready(fused_basic_blocks_forward(x_nhwc, blocks))

    ref = x_nhwc
    for (w1, g1, b1, w2, g2, b2) in blocks:
        ref = ref_basic_block(ref, w1, g1, b1, w2, g2, b2)
    ref = jax.block_until_ready(ref)

    # Conv operands run in bf16 on the MXU (f32 accumulation) across two
    # chained blocks, so compare to the f32 reference with bf16-level slack.
    if not np.allclose(np.asarray(out), np.asarray(ref), atol=7.5e-2, rtol=7.5e-2):
        err = float(np.max(np.abs(np.asarray(out) - np.asarray(ref))))
        raise AssertionError(
            f"Pallas kernel output mismatch vs JAX reference (max abs err {err})")

    print("KERNEL_OK")
</pallas_src>

<mosaic_0001>
module attributes {stable_mosaic.version = 11 : i64} {
  func.func @_fused_blocks_kernel(%arg0: memref<16x128xf32, #tpu.memory_space<vmem>>, %arg1: memref<3x128x128xbf16, #tpu.memory_space<vmem>>, %arg2: memref<1x4xf32, #tpu.memory_space<vmem>>, %arg3: memref<1x4xf32, #tpu.memory_space<vmem>>, %arg4: memref<3x128x128xbf16, #tpu.memory_space<vmem>>, %arg5: memref<1x4xf32, #tpu.memory_space<vmem>>, %arg6: memref<1x4xf32, #tpu.memory_space<vmem>>, %arg7: memref<3x128x128xbf16, #tpu.memory_space<vmem>>, %arg8: memref<1x4xf32, #tpu.memory_space<vmem>>, %arg9: memref<1x4xf32, #tpu.memory_space<vmem>>, %arg10: memref<3x128x128xbf16, #tpu.memory_space<vmem>>, %arg11: memref<1x4xf32, #tpu.memory_space<vmem>>, %arg12: memref<1x4xf32, #tpu.memory_space<vmem>>, %arg13: memref<128x4xf32, #tpu.memory_space<vmem>>, %arg14: memref<4x128xf32, #tpu.memory_space<vmem>>, %arg15: memref<16x128xf32, #tpu.memory_space<vmem>>, %arg16: memref<18x128xbf16, #tpu.memory_space<vmem>>) attributes {dimension_semantics = [], scalar_prefetch = 0 : i64, scratch_operands = 1 : i64, tpu.core_type = #tpu.core_type<tc>} {
    %c0 = arith.constant 0 : index
    %c0_0 = arith.constant 0 : index
    %0 = vector.load %arg13[%c0, %c0_0] : memref<128x4xf32, #tpu.memory_space<vmem>>, vector<128x4xf32>
    %c0_1 = arith.constant 0 : index
    %c0_2 = arith.constant 0 : index
    %1 = vector.load %arg14[%c0_1, %c0_2] : memref<4x128xf32, #tpu.memory_space<vmem>>, vector<4x128xf32>
    %cst = arith.constant 0.000000e+00 : bf16
    %2 = vector.broadcast %cst : bf16 to vector<1x128xbf16>
    %c0_3 = arith.constant 0 : index
    %c0_4 = arith.constant 0 : index
    %3 = vector.load %arg16[%c0_3, %c0_4] : memref<18x128xbf16, #tpu.memory_space<vmem>>, vector<1x128xbf16>
    tpu.vector_store %arg16[%c0_3, %c0_4], %2 {strides = array<i32>} : memref<18x128xbf16, #tpu.memory_space<vmem>>, vector<1x128xbf16>,
    %c17 = arith.constant 17 : index
    %c0_5 = arith.constant 0 : index
    %4 = vector.load %arg16[%c17, %c0_5] : memref<18x128xbf16, #tpu.memory_space<vmem>>, vector<1x128xbf16>
    tpu.vector_store %arg16[%c17, %c0_5], %2 {strides = array<i32>} : memref<18x128xbf16, #tpu.memory_space<vmem>>, vector<1x128xbf16>,
    %c0_6 = arith.constant 0 : index
    %c0_7 = arith.constant 0 : index
    %5 = vector.load %arg0[%c0_6, %c0_7] : memref<16x128xf32, #tpu.memory_space<vmem>>, vector<16x128xf32>
    %6 = arith.truncf %5 : vector<16x128xf32> to vector<16x128xbf16>
    %c1 = arith.constant 1 : index
    %c0_8 = arith.constant 0 : index
    %7 = vector.load %arg16[%c1, %c0_8] : memref<18x128xbf16, #tpu.memory_space<vmem>>, vector<16x128xbf16>
    tpu.vector_store %arg16[%c1, %c0_8], %6 {strides = array<i32>} : memref<18x128xbf16, #tpu.memory_space<vmem>>, vector<16x128xbf16>,
    %c0_9 = arith.constant 0 : index
    %c0_10 = arith.constant 0 : index
    %8 = vector.load %arg16[%c0_9, %c0_10] : memref<18x128xbf16, #tpu.memory_space<vmem>>, vector<16x128xbf16>
    %c0_11 = arith.constant 0 : index
    %c0_12 = arith.constant 0 : index
    %c0_13 = arith.constant 0 : index
    %9 = vector.load %arg1[%c0_11, %c0_12, %c0_13] : memref<3x128x128xbf16, #tpu.memory_space<vmem>>, vector<1x128x128xbf16>
    %10 = vector.shape_cast %9 : vector<1x128x128xbf16> to vector<128x128xbf16>
    %cst_14 = arith.constant dense<0.000000e+00> : vector<16x128xf32>
    %11 = tpu.matmul %8, %10, %cst_14 {dimension_numbers = #tpu.dot_dimension_numbers<[1], [0], [0], [1], [0, 0, 1, 1], [], []>} : vector<16x128xbf16>, vector<128x128xbf16>, vector<16x128xf32> -> vector<16x128xf32>
    %c1_15 = arith.constant 1 : index
    %c0_16 = arith.constant 0 : index
    %12 = vector.load %arg16[%c1_15, %c0_16] : memref<18x128xbf16, #tpu.memory_space<vmem>>, vector<16x128xbf16>
    %c1_17 = arith.constant 1 : index
    %c0_18 = arith.constant 0 : index
    %c0_19 = arith.constant 0 : index
    %13 = vector.load %arg1[%c1_17, %c0_18, %c0_19] : memref<3x128x128xbf16, #tpu.memory_space<vmem>>, vector<1x128x128xbf16>
    %14 = vector.shape_cast %13 : vector<1x128x128xbf16> to vector<128x128xbf16>
    %cst_20 = arith.constant dense<0.000000e+00> : vector<16x128xf32>
    %15 = tpu.matmul %12, %14, %cst_20 {dimension_numbers = #tpu.dot_dimension_numbers<[1], [0], [0], [1], [0, 0, 1, 1], [], []>} : vector<16x128xbf16>, vector<128x128xbf16>, vector<16x128xf32> -> vector<16x128xf32>
    %16 = arith.addf %11, %15 : vector<16x128xf32>
    %c2 = arith.constant 2 : index
    %c0_21 = arith.constant 0 : index
    %17 = vector.load %arg16[%c2, %c0_21] : memref<18x128xbf16, #tpu.memory_space<vmem>>, vector<16x128xbf16>
    %c2_22 = arith.constant 2 : index
    %c0_23 = arith.constant 0 : index
    %c0_24 = arith.constant 0 : index
    %18 = vector.load %arg1[%c2_22, %c0_23, %c0_24] : memref<3x128x128xbf16, #tpu.memory_space<vmem>>, vector<1x128x128xbf16>
    %19 = vector.shape_cast %18 : vector<1x128x128xbf16> to vector<128x128xbf16>
    %cst_25 = arith.constant dense<0.000000e+00> : vector<16x128xf32>
    %20 = tpu.matmul %17, %19, %cst_25 {dimension_numbers = #tpu.dot_dimension_numbers<[1], [0], [0], [1], [0, 0, 1, 1], [], []>} : vector<16x128xbf16>, vector<128x128xbf16>, vector<16x128xf32> -> vector<16x128xf32>
    %21 = arith.addf %16, %20 : vector<16x128xf32>
    %c0_26 = arith.constant 0 : index
    %c0_27 = arith.constant 0 : index
    %22 = vector.load %arg2[%c0_26, %c0_27] : memref<1x4xf32, #tpu.memory_space<vmem>>, vector<1x4xf32>
    %c0_28 = arith.constant 0 : index
    %c0_29 = arith.constant 0 : index
    %23 = vector.load %arg3[%c0_28, %c0_29] : memref<1x4xf32, #tpu.memory_space<vmem>>, vector<1x4xf32>
    %cst_30 = arith.constant dense<0.000000e+00> : vector<128xf32>
    %24 = vector.multi_reduction <add>, %21, %cst_30 [0] : vector<16x128xf32> to vector<128xf32>
    %25 = vector.shape_cast %24 : vector<128xf32> to vector<1x128xf32>
    %26 = arith.mulf %21, %21 : vector<16x128xf32>
    %cst_31 = arith.constant dense<0.000000e+00> : vector<128xf32>
    %27 = vector.multi_reduction <add>, %26, %cst_31 [0] : vector<16x128xf32> to vector<128xf32>
    %28 = vector.shape_cast %27 : vector<128xf32> to vector<1x128xf32>
    %29 = tpu.concatenate %25, %28 in 0 : vector<1x128xf32>, vector<1x128xf32> -> vector<2x128xf32>
    %cst_32 = arith.constant dense<0.000000e+00> : vector<2x4xf32>
    %30 = tpu.matmul %29, %0, %cst_32 {dimension_numbers = #tpu.dot_dimension_numbers<[1], [0], [0], [1], [0, 0, 1, 1], [], []>} : vector<2x128xf32>, vector<128x4xf32>, vector<2x4xf32> -> vector<2x4xf32>
    %31 = vector.extract_strided_slice %30 {offsets = [0, 0], sizes = [1, 4], strides = [1, 1]} : vector<2x4xf32> to vector<1x4xf32>
    %cst_33 = arith.constant 5.120000e+02 : f32
    %32 = vector.broadcast %cst_33 : f32 to vector<1x4xf32>
    %33 = arith.divf %31, %32 : vector<1x4xf32>
    %34 = vector.extract_strided_slice %30 {offsets = [1, 0], sizes = [1, 4], strides = [1, 1]} : vector<2x4xf32> to vector<1x4xf32>
    %cst_34 = arith.constant 5.120000e+02 : f32
    %35 = vector.broadcast %cst_34 : f32 to vector<1x4xf32>
    %36 = arith.divf %34, %35 : vector<1x4xf32>
    %37 = arith.mulf %33, %33 : vector<1x4xf32>
    %38 = arith.subf %36, %37 : vector<1x4xf32>
    %cst_35 = arith.constant 9.99999974E-6 : f32
    %39 = vector.broadcast %cst_35 : f32 to vector<1x4xf32>
    %40 = arith.addf %38, %39 : vector<1x4xf32>
    %41 = math.rsqrt %40 : vector<1x4xf32>
    %42 = arith.mulf %22, %41 : vector<1x4xf32>
    %43 = arith.mulf %33, %42 : vector<1x4xf32>
    %44 = arith.subf %23, %43 : vector<1x4xf32>
    %45 = tpu.concatenate %42, %44 in 0 : vector<1x4xf32>, vector<1x4xf32> -> vector<2x4xf32>
    %cst_36 = arith.constant dense<0.000000e+00> : vector<2x128xf32>
    %46 = tpu.matmul %45, %1, %cst_36 {dimension_numbers = #tpu.dot_dimension_numbers<[1], [0], [0], [1], [0, 0, 1, 1], [], []>} : vector<2x4xf32>, vector<4x128xf32>, vector<2x128xf32> -> vector<2x128xf32>
    %47 = vector.extract_strided_slice %46 {offsets = [0, 0], sizes = [1, 128], strides = [1, 1]} : vector<2x128xf32> to vector<1x128xf32>
    %48 = vector.broadcast %47 : vector<1x128xf32> to vector<16x128xf32>
    %49 = arith.mulf %21, %48 : vector<16x128xf32>
    %50 = vector.extract_strided_slice %46 {offsets = [1, 0], sizes = [1, 128], strides = [1, 1]} : vector<2x128xf32> to vector<1x128xf32>
    %51 = vector.broadcast %50 : vector<1x128xf32> to vector<16x128xf32>
    %52 = arith.addf %49, %51 : vector<16x128xf32>
    %cst_37 = arith.constant 0.000000e+00 : f32
    %53 = vector.broadcast %cst_37 : f32 to vector<16x128xf32>
    %54 = arith.maximumf %52, %53 : vector<16x128xf32>
    %55 = arith.truncf %54 : vector<16x128xf32> to vector<16x128xbf16>
    %c1_38 = arith.constant 1 : index
    %c0_39 = arith.constant 0 : index
    %56 = vector.load %arg16[%c1_38, %c0_39] : memref<18x128xbf16, #tpu.memory_space<vmem>>, vector<16x128xbf16>
    tpu.vector_store %arg16[%c1_38, %c0_39], %55 {strides = array<i32>} : memref<18x128xbf16, #tpu.memory_space<vmem>>, vector<16x128xbf16>,
    %c0_40 = arith.constant 0 : index
    %c0_41 = arith.constant 0 : index
    %57 = vector.load %arg16[%c0_40, %c0_41] : memref<18x128xbf16, #tpu.memory_space<vmem>>, vector<16x128xbf16>
    %c0_42 = arith.constant 0 : index
    %c0_43 = arith.constant 0 : index
    %c0_44 = arith.constant 0 : index
    %58 = vector.load %arg4[%c0_42, %c0_43, %c0_44] : memref<3x128x128xbf16, #tpu.memory_space<vmem>>, vector<1x128x128xbf16>
    %59 = vector.shape_cast %58 : vector<1x128x128xbf16> to vector<128x128xbf16>
    %cst_45 = arith.constant dense<0.000000e+00> : vector<16x128xf32>
    %60 = tpu.matmul %57, %59, %cst_45 {dimension_numbers = #tpu.dot_dimension_numbers<[1], [0], [0], [1], [0, 0, 1, 1], [], []>} : vector<16x128xbf16>, vector<128x128xbf16>, vector<16x128xf32> -> vector<16x128xf32>
    %c1_46 = arith.constant 1 : index
    %c0_47 = arith.constant 0 : index
    %61 = vector.load %arg16[%c1_46, %c0_47] : memref<18x128xbf16, #tpu.memory_space<vmem>>, vector<16x128xbf16>
    %c1_48 = arith.constant 1 : index
    %c0_49 = arith.constant 0 : index
    %c0_50 = arith.constant 0 : index
    %62 = vector.load %arg4[%c1_48, %c0_49, %c0_50] : memref<3x128x128xbf16, #tpu.memory_space<vmem>>, vector<1x128x128xbf16>
    %63 = vector.shape_cast %62 : vector<1x128x128xbf16> to vector<128x128xbf16>
    %cst_51 = arith.constant dense<0.000000e+00> : vector<16x128xf32>
    %64 = tpu.matmul %61, %63, %cst_51 {dimension_numbers = #tpu.dot_dimension_numbers<[1], [0], [0], [1], [0, 0, 1, 1], [], []>} : vector<16x128xbf16>, vector<128x128xbf16>, vector<16x128xf32> -> vector<16x128xf32>
    %65 = arith.addf %60, %64 : vector<16x128xf32>
    %c2_52 = arith.constant 2 : index
    %c0_53 = arith.constant 0 : index
    %66 = vector.load %arg16[%c2_52, %c0_53] : memref<18x128xbf16, #tpu.memory_space<vmem>>, vector<16x128xbf16>
    %c2_54 = arith.constant 2 : index
    %c0_55 = arith.constant 0 : index
    %c0_56 = arith.constant 0 : index
    %67 = vector.load %arg4[%c2_54, %c0_55, %c0_56] : memref<3x128x128xbf16, #tpu.memory_space<vmem>>, vector<1x128x128xbf16>
    %68 = vector.shape_cast %67 : vector<1x128x128xbf16> to vector<128x128xbf16>
    %cst_57 = arith.constant dense<0.000000e+00> : vector<16x128xf32>
    %69 = tpu.matmul %66, %68, %cst_57 {dimension_numbers = #tpu.dot_dimension_numbers<[1], [0], [0], [1], [0, 0, 1, 1], [], []>} : vector<16x128xbf16>, vector<128x128xbf16>, vector<16x128xf32> -> vector<16x128xf32>
    %70 = arith.addf %65, %69 : vector<16x128xf32>
    %c0_58 = arith.constant 0 : index
    %c0_59 = arith.constant 0 : index
    %71 = vector.load %arg5[%c0_58, %c0_59] : memref<1x4xf32, #tpu.memory_space<vmem>>, vector<1x4xf32>
    %c0_60 = arith.constant 0 : index
    %c0_61 = arith.constant 0 : index
    %72 = vector.load %arg6[%c0_60, %c0_61] : memref<1x4xf32, #tpu.memory_space<vmem>>, vector<1x4xf32>
    %cst_62 = arith.constant dense<0.000000e+00> : vector<128xf32>
    %73 = vector.multi_reduction <add>, %70, %cst_62 [0] : vector<16x128xf32> to vector<128xf32>
    %74 = vector.shape_cast %73 : vector<128xf32> to vector<1x128xf32>
    %75 = arith.mulf %70, %70 : vector<16x128xf32>
    %cst_63 = arith.constant dense<0.000000e+00> : vector<128xf32>
    %76 = vector.multi_reduction <add>, %75, %cst_63 [0] : vector<16x128xf32> to vector<128xf32>
    %77 = vector.shape_cast %76 : vector<128xf32> to vector<1x128xf32>
    %78 = tpu.concatenate %74, %77 in 0 : vector<1x128xf32>, vector<1x128xf32> -> vector<2x128xf32>
    %cst_64 = arith.constant dense<0.000000e+00> : vector<2x4xf32>
    %79 = tpu.matmul %78, %0, %cst_64 {dimension_numbers = #tpu.dot_dimension_numbers<[1], [0], [0], [1], [0, 0, 1, 1], [], []>} : vector<2x128xf32>, vector<128x4xf32>, vector<2x4xf32> -> vector<2x4xf32>
    %80 = vector.extract_strided_slice %79 {offsets = [0, 0], sizes = [1, 4], strides = [1, 1]} : vector<2x4xf32> to vector<1x4xf32>
    %cst_65 = arith.constant 5.120000e+02 : f32
    %81 = vector.broadcast %cst_65 : f32 to vector<1x4xf32>
    %82 = arith.divf %80, %81 : vector<1x4xf32>
    %83 = vector.extract_strided_slice %79 {offsets = [1, 0], sizes = [1, 4], strides = [1, 1]} : vector<2x4xf32> to vector<1x4xf32>
    %cst_66 = arith.constant 5.120000e+02 : f32
    %84 = vector.broadcast %cst_66 : f32 to vector<1x4xf32>
    %85 = arith.divf %83, %84 : vector<1x4xf32>
    %86 = arith.mulf %82, %82 : vector<1x4xf32>
    %87 = arith.subf %85, %86 : vector<1x4xf32>
    %cst_67 = arith.constant 9.99999974E-6 : f32
    %88 = vector.broadcast %cst_67 : f32 to vector<1x4xf32>
    %89 = arith.addf %87, %88 : vector<1x4xf32>
    %90 = math.rsqrt %89 : vector<1x4xf32>
    %91 = arith.mulf %71, %90 : vector<1x4xf32>
    %92 = arith.mulf %82, %91 : vector<1x4xf32>
    %93 = arith.subf %72, %92 : vector<1x4xf32>
    %94 = tpu.concatenate %91, %93 in 0 : vector<1x4xf32>, vector<1x4xf32> -> vector<2x4xf32>
    %cst_68 = arith.constant dense<0.000000e+00> : vector<2x128xf32>
    %95 = tpu.matmul %94, %1, %cst_68 {dimension_numbers = #tpu.dot_dimension_numbers<[1], [0], [0], [1], [0, 0, 1, 1], [], []>} : vector<2x4xf32>, vector<4x128xf32>, vector<2x128xf32> -> vector<2x128xf32>
    %96 = vector.extract_strided_slice %95 {offsets = [0, 0], sizes = [1, 128], strides = [1, 1]} : vector<2x128xf32> to vector<1x128xf32>
    %97 = vector.broadcast %96 : vector<1x128xf32> to vector<16x128xf32>
    %98 = arith.mulf %70, %97 : vector<16x128xf32>
    %99 = vector.extract_strided_slice %95 {offsets = [1, 0], sizes = [1, 128], strides = [1, 1]} : vector<2x128xf32> to vector<1x128xf32>
    %100 = vector.broadcast %99 : vector<1x128xf32> to vector<16x128xf32>
    %101 = arith.addf %98, %100 : vector<16x128xf32>
    %102 = arith.addf %101, %5 : vector<16x128xf32>
    %cst_69 = arith.constant 0.000000e+00 : f32
    %103 = vector.broadcast %cst_69 : f32 to vector<16x128xf32>
    %104 = arith.maximumf %102, %103 : vector<16x128xf32>
    %105 = arith.truncf %104 : vector<16x128xf32> to vector<16x128xbf16>
    %c1_70 = arith.constant 1 : index
    %c0_71 = arith.constant 0 : index
    %106 = vector.load %arg16[%c1_70, %c0_71] : memref<18x128xbf16, #tpu.memory_space<vmem>>, vector<16x128xbf16>
    tpu.vector_store %arg16[%c1_70, %c0_71], %105 {strides = array<i32>} : memref<18x128xbf16, #tpu.memory_space<vmem>>, vector<16x128xbf16>,
    %c0_72 = arith.constant 0 : index
    %c0_73 = arith.constant 0 : index
    %107 = vector.load %arg16[%c0_72, %c0_73] : memref<18x128xbf16, #tpu.memory_space<vmem>>, vector<16x128xbf16>
    %c0_74 = arith.constant 0 : index
    %c0_75 = arith.constant 0 : index
    %c0_76 = arith.constant 0 : index
    %108 = vector.load %arg7[%c0_74, %c0_75, %c0_76] : memref<3x128x128xbf16, #tpu.memory_space<vmem>>, vector<1x128x128xbf16>
    %109 = vector.shape_cast %108 : vector<1x128x128xbf16> to vector<128x128xbf16>
    %cst_77 = arith.constant dense<0.000000e+00> : vector<16x128xf32>
    %110 = tpu.matmul %107, %109, %cst_77 {dimension_numbers = #tpu.dot_dimension_numbers<[1], [0], [0], [1], [0, 0, 1, 1], [], []>} : vector<16x128xbf16>, vector<128x128xbf16>, vector<16x128xf32> -> vector<16x128xf32>
    %c1_78 = arith.constant 1 : index
    %c0_79 = arith.constant 0 : index
    %111 = vector.load %arg16[%c1_78, %c0_79] : memref<18x128xbf16, #tpu.memory_space<vmem>>, vector<16x128xbf16>
    %c1_80 = arith.constant 1 : index
    %c0_81 = arith.constant 0 : index
    %c0_82 = arith.constant 0 : index
    %112 = vector.load %arg7[%c1_80, %c0_81, %c0_82] : memref<3x128x128xbf16, #tpu.memory_space<vmem>>, vector<1x128x128xbf16>
    %113 = vector.shape_cast %112 : vector<1x128x128xbf16> to vector<128x128xbf16>
    %cst_83 = arith.constant dense<0.000000e+00> : vector<16x128xf32>
    %114 = tpu.matmul %111, %113, %cst_83 {dimension_numbers = #tpu.dot_dimension_numbers<[1], [0], [0], [1], [0, 0, 1, 1], [], []>} : vector<16x128xbf16>, vector<128x128xbf16>, vector<16x128xf32> -> vector<16x128xf32>
    %115 = arith.addf %110, %114 : vector<16x128xf32>
    %c2_84 = arith.constant 2 : index
    %c0_85 = arith.constant 0 : index
    %116 = vector.load %arg16[%c2_84, %c0_85] : memref<18x128xbf16, #tpu.memory_space<vmem>>, vector<16x128xbf16>
    %c2_86 = arith.constant 2 : index
    %c0_87 = arith.constant 0 : index
    %c0_88 = arith.constant 0 : index
    %117 = vector.load %arg7[%c2_86, %c0_87, %c0_88] : memref<3x128x128xbf16, #tpu.memory_space<vmem>>, vector<1x128x128xbf16>
    %118 = vector.shape_cast %117 : vector<1x128x128xbf16> to vector<128x128xbf16>
    %cst_89 = arith.constant dense<0.000000e+00> : vector<16x128xf32>
    %119 = tpu.matmul %116, %118, %cst_89 {dimension_numbers = #tpu.dot_dimension_numbers<[1], [0], [0], [1], [0, 0, 1, 1], [], []>} : vector<16x128xbf16>, vector<128x128xbf16>, vector<16x128xf32> -> vector<16x128xf32>
    %120 = arith.addf %115, %119 : vector<16x128xf32>
    %c0_90 = arith.constant 0 : index
    %c0_91 = arith.constant 0 : index
    %121 = vector.load %arg8[%c0_90, %c0_91] : memref<1x4xf32, #tpu.memory_space<vmem>>, vector<1x4xf32>
    %c0_92 = arith.constant 0 : index
    %c0_93 = arith.constant 0 : index
    %122 = vector.load %arg9[%c0_92, %c0_93] : memref<1x4xf32, #tpu.memory_space<vmem>>, vector<1x4xf32>
    %cst_94 = arith.constant dense<0.000000e+00> : vector<128xf32>
    %123 = vector.multi_reduction <add>, %120, %cst_94 [0] : vector<16x128xf32> to vector<128xf32>
    %124 = vector.shape_cast %123 : vector<128xf32> to vector<1x128xf32>
    %125 = arith.mulf %120, %120 : vector<16x128xf32>
    %cst_95 = arith.constant dense<0.000000e+00> : vector<128xf32>
    %126 = vector.multi_reduction <add>, %125, %cst_95 [0] : vector<16x128xf32> to vector<128xf32>
    %127 = vector.shape_cast %126 : vector<128xf32> to vector<1x128xf32>
    %128 = tpu.concatenate %124, %127 in 0 : vector<1x128xf32>, vector<1x128xf32> -> vector<2x128xf32>
    %cst_96 = arith.constant dense<0.000000e+00> : vector<2x4xf32>
    %129 = tpu.matmul %128, %0, %cst_96 {dimension_numbers = #tpu.dot_dimension_numbers<[1], [0], [0], [1], [0, 0, 1, 1], [], []>} : vector<2x128xf32>, vector<128x4xf32>, vector<2x4xf32> -> vector<2x4xf32>
    %130 = vector.extract_strided_slice %129 {offsets = [0, 0], sizes = [1, 4], strides = [1, 1]} : vector<2x4xf32> to vector<1x4xf32>
    %cst_97 = arith.constant 5.120000e+02 : f32
    %131 = vector.broadcast %cst_97 : f32 to vector<1x4xf32>
    %132 = arith.divf %130, %131 : vector<1x4xf32>
    %133 = vector.extract_strided_slice %129 {offsets = [1, 0], sizes = [1, 4], strides = [1, 1]} : vector<2x4xf32> to vector<1x4xf32>
    %cst_98 = arith.constant 5.120000e+02 : f32
    %134 = vector.broadcast %cst_98 : f32 to vector<1x4xf32>
    %135 = arith.divf %133, %134 : vector<1x4xf32>
    %136 = arith.mulf %132, %132 : vector<1x4xf32>
    %137 = arith.subf %135, %136 : vector<1x4xf32>
    %cst_99 = arith.constant 9.99999974E-6 : f32
    %138 = vector.broadcast %cst_99 : f32 to vector<1x4xf32>
    %139 = arith.addf %137, %138 : vector<1x4xf32>
    %140 = math.rsqrt %139 : vector<1x4xf32>
    %141 = arith.mulf %121, %140 : vector<1x4xf32>
    %142 = arith.mulf %132, %141 : vector<1x4xf32>
    %143 = arith.subf %122, %142 : vector<1x4xf32>
    %144 = tpu.concatenate %141, %143 in 0 : vector<1x4xf32>, vector<1x4xf32> -> vector<2x4xf32>
    %cst_100 = arith.constant dense<0.000000e+00> : vector<2x128xf32>
    %145 = tpu.matmul %144, %1, %cst_100 {dimension_numbers = #tpu.dot_dimension_numbers<[1], [0], [0], [1], [0, 0, 1, 1], [], []>} : vector<2x4xf32>, vector<4x128xf32>, vector<2x128xf32> -> vector<2x128xf32>
    %146 = vector.extract_strided_slice %145 {offsets = [0, 0], sizes = [1, 128], strides = [1, 1]} : vector<2x128xf32> to vector<1x128xf32>
    %147 = vector.broadcast %146 : vector<1x128xf32> to vector<16x128xf32>
    %148 = arith.mulf %120, %147 : vector<16x128xf32>
    %149 = vector.extract_strided_slice %145 {offsets = [1, 0], sizes = [1, 128], strides = [1, 1]} : vector<2x128xf32> to vector<1x128xf32>
    %150 = vector.broadcast %149 : vector<1x128xf32> to vector<16x128xf32>
    %151 = arith.addf %148, %150 : vector<16x128xf32>
    %cst_101 = arith.constant 0.000000e+00 : f32
    %152 = vector.broadcast %cst_101 : f32 to vector<16x128xf32>
    %153 = arith.maximumf %151, %152 : vector<16x128xf32>
    %154 = arith.truncf %153 : vector<16x128xf32> to vector<16x128xbf16>
    %c1_102 = arith.constant 1 : index
    %c0_103 = arith.constant 0 : index
    %155 = vector.load %arg16[%c1_102, %c0_103] : memref<18x128xbf16, #tpu.memory_space<vmem>>, vector<16x128xbf16>
    tpu.vector_store %arg16[%c1_102, %c0_103], %154 {strides = array<i32>} : memref<18x128xbf16, #tpu.memory_space<vmem>>, vector<16x128xbf16>,
    %c0_104 = arith.constant 0 : index
    %c0_105 = arith.constant 0 : index
    %156 = vector.load %arg16[%c0_104, %c0_105] : memref<18x128xbf16, #tpu.memory_space<vmem>>, vector<16x128xbf16>
    %c0_106 = arith.constant 0 : index
    %c0_107 = arith.constant 0 : index
    %c0_108 = arith.constant 0 : index
    %157 = vector.load %arg10[%c0_106, %c0_107, %c0_108] : memref<3x128x128xbf16, #tpu.memory_space<vmem>>, vector<1x128x128xbf16>
    %158 = vector.shape_cast %157 : vector<1x128x128xbf16> to vector<128x128xbf16>
    %cst_109 = arith.constant dense<0.000000e+00> : vector<16x128xf32>
    %159 = tpu.matmul %156, %158, %cst_109 {dimension_numbers = #tpu.dot_dimension_numbers<[1], [0], [0], [1], [0, 0, 1, 1], [], []>} : vector<16x128xbf16>, vector<128x128xbf16>, vector<16x128xf32> -> vector<16x128xf32>
    %c1_110 = arith.constant 1 : index
    %c0_111 = arith.constant 0 : index
    %160 = vector.load %arg16[%c1_110, %c0_111] : memref<18x128xbf16, #tpu.memory_space<vmem>>, vector<16x128xbf16>
    %c1_112 = arith.constant 1 : index
    %c0_113 = arith.constant 0 : index
    %c0_114 = arith.constant 0 : index
    %161 = vector.load %arg10[%c1_112, %c0_113, %c0_114] : memref<3x128x128xbf16, #tpu.memory_space<vmem>>, vector<1x128x128xbf16>
    %162 = vector.shape_cast %161 : vector<1x128x128xbf16> to vector<128x128xbf16>
    %cst_115 = arith.constant dense<0.000000e+00> : vector<16x128xf32>
    %163 = tpu.matmul %160, %162, %cst_115 {dimension_numbers = #tpu.dot_dimension_numbers<[1], [0], [0], [1], [0, 0, 1, 1], [], []>} : vector<16x128xbf16>, vector<128x128xbf16>, vector<16x128xf32> -> vector<16x128xf32>
    %164 = arith.addf %159, %163 : vector<16x128xf32>
    %c2_116 = arith.constant 2 : index
    %c0_117 = arith.constant 0 : index
    %165 = vector.load %arg16[%c2_116, %c0_117] : memref<18x128xbf16, #tpu.memory_space<vmem>>, vector<16x128xbf16>
    %c2_118 = arith.constant 2 : index
    %c0_119 = arith.constant 0 : index
    %c0_120 = arith.constant 0 : index
    %166 = vector.load %arg10[%c2_118, %c0_119, %c0_120] : memref<3x128x128xbf16, #tpu.memory_space<vmem>>, vector<1x128x128xbf16>
    %167 = vector.shape_cast %166 : vector<1x128x128xbf16> to vector<128x128xbf16>
    %cst_121 = arith.constant dense<0.000000e+00> : vector<16x128xf32>
    %168 = tpu.matmul %165, %167, %cst_121 {dimension_numbers = #tpu.dot_dimension_numbers<[1], [0], [0], [1], [0, 0, 1, 1], [], []>} : vector<16x128xbf16>, vector<128x128xbf16>, vector<16x128xf32> -> vector<16x128xf32>
    %169 = arith.addf %164, %168 : vector<16x128xf32>
    %c0_122 = arith.constant 0 : index
    %c0_123 = arith.constant 0 : index
    %170 = vector.load %arg11[%c0_122, %c0_123] : memref<1x4xf32, #tpu.memory_space<vmem>>, vector<1x4xf32>
    %c0_124 = arith.constant 0 : index
    %c0_125 = arith.constant 0 : index
    %171 = vector.load %arg12[%c0_124, %c0_125] : memref<1x4xf32, #tpu.memory_space<vmem>>, vector<1x4xf32>
    %cst_126 = arith.constant dense<0.000000e+00> : vector<128xf32>
    %172 = vector.multi_reduction <add>, %169, %cst_126 [0] : vector<16x128xf32> to vector<128xf32>
    %173 = vector.shape_cast %172 : vector<128xf32> to vector<1x128xf32>
    %174 = arith.mulf %169, %169 : vector<16x128xf32>
    %cst_127 = arith.constant dense<0.000000e+00> : vector<128xf32>
    %175 = vector.multi_reduction <add>, %174, %cst_127 [0] : vector<16x128xf32> to vector<128xf32>
    %176 = vector.shape_cast %175 : vector<128xf32> to vector<1x128xf32>
    %177 = tpu.concatenate %173, %176 in 0 : vector<1x128xf32>, vector<1x128xf32> -> vector<2x128xf32>
    %cst_128 = arith.constant dense<0.000000e+00> : vector<2x4xf32>
    %178 = tpu.matmul %177, %0, %cst_128 {dimension_numbers = #tpu.dot_dimension_numbers<[1], [0], [0], [1], [0, 0, 1, 1], [], []>} : vector<2x128xf32>, vector<128x4xf32>, vector<2x4xf32> -> vector<2x4xf32>
    %179 = vector.extract_strided_slice %178 {offsets = [0, 0], sizes = [1, 4], strides = [1, 1]} : vector<2x4xf32> to vector<1x4xf32>
    %cst_129 = arith.constant 5.120000e+02 : f32
    %180 = vector.broadcast %cst_129 : f32 to vector<1x4xf32>
    %181 = arith.divf %179, %180 : vector<1x4xf32>
    %182 = vector.extract_strided_slice %178 {offsets = [1, 0], sizes = [1, 4], strides = [1, 1]} : vector<2x4xf32> to vector<1x4xf32>
    %cst_130 = arith.constant 5.120000e+02 : f32
    %183 = vector.broadcast %cst_130 : f32 to vector<1x4xf32>
    %184 = arith.divf %182, %183 : vector<1x4xf32>
    %185 = arith.mulf %181, %181 : vector<1x4xf32>
    %186 = arith.subf %184, %185 : vector<1x4xf32>
    %cst_131 = arith.constant 9.99999974E-6 : f32
    %187 = vector.broadcast %cst_131 : f32 to vector<1x4xf32>
    %188 = arith.addf %186, %187 : vector<1x4xf32>
    %189 = math.rsqrt %188 : vector<1x4xf32>
    %190 = arith.mulf %170, %189 : vector<1x4xf32>
    %191 = arith.mulf %181, %190 : vector<1x4xf32>
    %192 = arith.subf %171, %191 : vector<1x4xf32>
    %193 = tpu.concatenate %190, %192 in 0 : vector<1x4xf32>, vector<1x4xf32> -> vector<2x4xf32>
    %cst_132 = arith.constant dense<0.000000e+00> : vector<2x128xf32>
    %194 = tpu.matmul %193, %1, %cst_132 {dimension_numbers = #tpu.dot_dimension_numbers<[1], [0], [0], [1], [0, 0, 1, 1], [], []>} : vector<2x4xf32>, vector<4x128xf32>, vector<2x128xf32> -> vector<2x128xf32>
    %195 = vector.extract_strided_slice %194 {offsets = [0, 0], sizes = [1, 128], strides = [1, 1]} : vector<2x128xf32> to vector<1x128xf32>
    %196 = vector.broadcast %195 : vector<1x128xf32> to vector<16x128xf32>
    %197 = arith.mulf %169, %196 : vector<16x128xf32>
    %198 = vector.extract_strided_slice %194 {offsets = [1, 0], sizes = [1, 128], strides = [1, 1]} : vector<2x128xf32> to vector<1x128xf32>
    %199 = vector.broadcast %198 : vector<1x128xf32> to vector<16x128xf32>
    %200 = arith.addf %197, %199 : vector<16x128xf32>
    %201 = arith.addf %200, %104 : vector<16x128xf32>
    %cst_133 = arith.constant 0.000000e+00 : f32
    %202 = vector.broadcast %cst_133 : f32 to vector<16x128xf32>
    %203 = arith.maximumf %201, %202 : vector<16x128xf32>
    %c0_134 = arith.constant 0 : index
    %c0_135 = arith.constant 0 : index
    %204 = vector.load %arg15[%c0_134, %c0_135] : memref<16x128xf32, #tpu.memory_space<vmem>>, vector<16x128xf32>
    tpu.vector_store %arg15[%c0_134, %c0_135], %203 {strides = array<i32>} : memref<16x128xf32, #tpu.memory_space<vmem>>, vector<16x128xf32>,
    return
  }
}

</mosaic_0001>

<llo_original>
// kernel: tpu_custom_call.1
$region0: #{tpu_custom_call.1}
  #allocation0 [shape = 'u32[]', space=smem, size = 0x4, offset = 0x4, fixed_abs, tag = 'smem constant byte address 0x4 - core index']
  #allocation1 [shape = 'u32[144,128]{1,0:T(1,128)}', space=vmem, size = 0x12000, scoped, tag = 'internal scratch']
  #allocation2 [shape = 'bf16[18,128]{1,0:T(8,128)(2,1)}', space=vmem, size = 0x1800, scoped, tag = 'scratch operand']
  %s0 = inlined_call_operand.vmem [shape: f32[16,128], index: 0, kind: input, shape index: {}]
  %s1 = inlined_call_operand.hbm [shape: bf16[3,128,128], index: 1, kind: input, shape index: {}]
  %s2 = inlined_call_operand.vmem [shape: f32[1,4], index: 2, kind: input, shape index: {}]
  %s3 = inlined_call_operand.vmem [shape: f32[1,4], index: 3, kind: input, shape index: {}]
  %s4 = inlined_call_operand.hbm [shape: bf16[3,128,128], index: 4, kind: input, shape index: {}]
  %s5 = inlined_call_operand.vmem [shape: f32[1,4], index: 5, kind: input, shape index: {}]
  %s6 = inlined_call_operand.vmem [shape: f32[1,4], index: 6, kind: input, shape index: {}]
  %s7 = inlined_call_operand.hbm [shape: bf16[3,128,128], index: 7, kind: input, shape index: {}]
  %s8 = inlined_call_operand.vmem [shape: f32[1,4], index: 8, kind: input, shape index: {}]
  %s9 = inlined_call_operand.vmem [shape: f32[1,4], index: 9, kind: input, shape index: {}]
  %s10 = inlined_call_operand.hbm [shape: bf16[3,128,128], index: 10, kind: input, shape index: {}]
  %s11 = inlined_call_operand.vmem [shape: f32[1,4], index: 11, kind: input, shape index: {}]
  %s12 = inlined_call_operand.vmem [shape: f32[1,4], index: 12, kind: input, shape index: {}]
  %s13 = inlined_call_operand.vmem [shape: f32[128,4], index: 13, kind: input, shape index: {}]
  %s14 = inlined_call_operand.vmem [shape: f32[4,128], index: 14, kind: input, shape index: {}]
  %s15 = inlined_call_operand.hbm [shape: f32[16,128], index: 15, kind: output, shape index: {}]
  %s16 = sld [smem:[#allocation0]]
  $region86: #{tpu_custom_call.1} parent=0
    _
  %s18 = ssub.s32 1, %s16
  %s19 = scalar_select 0, %s18, %s16
  $region1: #{tpu_custom_call.1} parent=0
    #allocation3 [shape = 'u8[98304]{0}', space=vmem, size = 0x18000, scoped, tag = 'input window, operand 1, single buffered']
    #allocation4 [shape = 's32[1]{0}', space=sflag, size = 0x4, scoped, tag = 'scoped memory for tpu_custom_call.1']
    #allocation5 [shape = 's32[1]{0}', space=sflag, size = 0x4, scoped, tag = 'scoped memory for tpu_custom_call.1']
    #allocation6 [shape = 'u8[98304]{0}', space=vmem, size = 0x18000, scoped, tag = 'input window, operand 4, single buffered']
    #allocation7 [shape = 's32[1]{0}', space=sflag, size = 0x4, scoped, tag = 'scoped memory for tpu_custom_call.1']
    #allocation8 [shape = 'u8[98304]{0}', space=vmem, size = 0x18000, scoped, tag = 'input window, operand 7, single buffered']
    #allocation9 [shape = 'u8[98304]{0}', space=vmem, size = 0x18000, scoped, tag = 'input window, operand 10, single buffered']
    #allocation10 [shape = 's32[1]{0}', space=sflag, size = 0x4, scoped, tag = 'scoped memory for tpu_custom_call.1']
    #allocation11 [shape = 'u8[8192]{0}', space=vmem, size = 0x2000, scoped, tag = 'output window, operand 0, single buffered']
    %20 = vsyncpa [#allocation4], 0
    %21 = vsyncpa [#allocation7], 0
    %22 = vsyncpa [#allocation10], 0
    %23 = vsyncpa [#allocation5], 0
    // Predicated region
    $region2: #{tpu_custom_call.1} parent=1 // pred_check
      _
    $region3: #{tpu_custom_call.1} parent=1 // pred_check_branch
      %25 = sbr.rel (0) target = $region5
    $region4: #{tpu_custom_call.1} parent=1 // pred_region
      _
    $region5: #{tpu_custom_call.1} parent=1 // pred_fallthru
      _
    // Predicated region
    $region6: #{tpu_custom_call.1} parent=1 // pred_check
      _
    $region7: #{tpu_custom_call.1} parent=1 // pred_check_branch
      %27 = sbr.rel (0) target = $region9
    $region8: #{tpu_custom_call.1} parent=1 // pred_region
      %s29 = ssub.s32 3072, 3072
      %30 = vsyncadd [#allocation4], %s29
      %s31 = sshll.u32 [#allocation3], 4
      %s32 = int_to_ptr.vmem [resolvable:$true] %s31
      %37 = dma.hbm_to_vmem [thread:$0]  %s1, 3072, %s32, [#allocation4], 64, 64, 4
    $region9: #{tpu_custom_call.1} parent=1 // pred_fallthru
      _
    // Predicated region
    $region10: #{tpu_custom_call.1} parent=1 // pred_check
      _
    $region11: #{tpu_custom_call.1} parent=1 // pred_check_branch
      %39 = sbr.rel (0) target = $region13
    $region12: #{tpu_custom_call.1} parent=1 // pred_region
      _
    $region13: #{tpu_custom_call.1} parent=1 // pred_fallthru
      _
    // Predicated region
    $region14: #{tpu_custom_call.1} parent=1 // pred_check
      _
    $region15: #{tpu_custom_call.1} parent=1 // pred_check_branch
      %41 = sbr.rel (0) target = $region17
    $region16: #{tpu_custom_call.1} parent=1 // pred_region
      _
    $region17: #{tpu_custom_call.1} parent=1 // pred_fallthru
      _
    // Predicated region
    $region18: #{tpu_custom_call.1} parent=1 // pred_check
      _
    $region19: #{tpu_custom_call.1} parent=1 // pred_check_branch
      %43 = sbr.rel (0) target = $region21
    $region20: #{tpu_custom_call.1} parent=1 // pred_region
      %s45 = ssub.s32 3072, 3072
      %46 = vsyncadd [#allocation7], %s45
      %s47 = sshll.u32 [#allocation6], 4
      %s48 = int_to_ptr.vmem [resolvable:$true] %s47
      %53 = dma.hbm_to_vmem [thread:$0]  %s4, 3072, %s48, [#allocation7], 64, 64, 4
    $region21: #{tpu_custom_call.1} parent=1 // pred_fallthru
      _
    // Predicated region
    $region22: #{tpu_custom_call.1} parent=1 // pred_check
      _
    $region23: #{tpu_custom_call.1} parent=1 // pred_check_branch
      %55 = sbr.rel (0) target = $region25
    $region24: #{tpu_custom_call.1} parent=1 // pred_region
      _
    $region25: #{tpu_custom_call.1} parent=1 // pred_fallthru
      _
    // Predicated region
    $region26: #{tpu_custom_call.1} parent=1 // pred_check
      _
    $region27: #{tpu_custom_call.1} parent=1 // pred_check_branch
      %57 = sbr.rel (0) target = $region29
    $region28: #{tpu_custom_call.1} parent=1 // pred_region
      _
    $region29: #{tpu_custom_call.1} parent=1 // pred_fallthru
      _
    // Predicated region
    $region30: #{tpu_custom_call.1} parent=1 // pred_check
      _
    $region31: #{tpu_custom_call.1} parent=1 // pred_check_branch
      %59 = sbr.rel (0) target = $region33
    $region32: #{tpu_custom_call.1} parent=1 // pred_region
      %s61 = ssub.s32 3072, 3072
      %62 = vsyncadd [#allocation7], %s61
      %s63 = sshll.u32 [#allocation8], 4
      %s64 = int_to_ptr.vmem [resolvable:$true] %s63
      %69 = dma.hbm_to_vmem [thread:$0]  %s7, 3072, %s64, [#allocation7], 64, 64, 4
    $region33: #{tpu_custom_call.1} parent=1 // pred_fallthru
      _
    // Predicated region
    $region34: #{tpu_custom_call.1} parent=1 // pred_check
      _
    $region35: #{tpu_custom_call.1} parent=1 // pred_check_branch
      %71 = sbr.rel (0) target = $region37
    $region36: #{tpu_custom_call.1} parent=1 // pred_region
      _
    $region37: #{tpu_custom_call.1} parent=1 // pred_fallthru
      _
    // Predicated region
    $region38: #{tpu_custom_call.1} parent=1 // pred_check
      _
    $region39: #{tpu_custom_call.1} parent=1 // pred_check_branch
      %73 = sbr.rel (0) target = $region41
    $region40: #{tpu_custom_call.1} parent=1 // pred_region
      _
    $region41: #{tpu_custom_call.1} parent=1 // pred_fallthru
      _
    // Predicated region
    $region42: #{tpu_custom_call.1} parent=1 // pred_check
      _
    $region43: #{tpu_custom_call.1} parent=1 // pred_check_branch
      %75 = sbr.rel (0) target = $region45
    $region44: #{tpu_custom_call.1} parent=1 // pred_region
      %s77 = ssub.s32 3072, 3072
      %78 = vsyncadd [#allocation10], %s77
      %s79 = sshll.u32 [#allocation9], 4
      %s80 = int_to_ptr.vmem [resolvable:$true] %s79
      %85 = dma.hbm_to_vmem [thread:$0]  %s10, 3072, %s80, [#allocation10], 64, 64, 4
    $region45: #{tpu_custom_call.1} parent=1 // pred_fallthru
      _
    // Predicated region
    $region46: #{tpu_custom_call.1} parent=1 // pred_check
      _
    $region47: #{tpu_custom_call.1} parent=1 // pred_check_branch
      %87 = sbr.rel (0) target = $region49
    $region48: #{tpu_custom_call.1} parent=1 // pred_region
      _
    $region49: #{tpu_custom_call.1} parent=1 // pred_fallthru
      _
    // Predicated region
    $region50: #{tpu_custom_call.1} parent=1 // pred_check
      _
    $region51: #{tpu_custom_call.1} parent=1 // pred_check_branch
      %89 = sbr.rel (0) target = $region53
    $region52: #{tpu_custom_call.1} parent=1 // pred_region
      _
    $region53: #{tpu_custom_call.1} parent=1 // pred_fallthru
      _
    // Predicated region
    $region54: #{tpu_custom_call.1} parent=1 // pred_check
      _
    $region55: #{tpu_custom_call.1} parent=1 // pred_check_branch
      %91 = sbr.rel (0) target = $region57
    $region56: #{tpu_custom_call.1} parent=1 // pred_region
      _
    $region57: #{tpu_custom_call.1} parent=1 // pred_fallthru
      _
    // Predicated region
    $region58: #{tpu_custom_call.1} parent=1 // pred_check
      _
    $region59: #{tpu_custom_call.1} parent=1 // pred_check_branch
      %93 = sbr.rel (0) target = $region61
    $region60: #{tpu_custom_call.1} parent=1 // pred_region
      _
    $region61: #{tpu_custom_call.1} parent=1 // pred_fallthru
      _
    // Predicated region
    $region62: #{tpu_custom_call.1} parent=1 // pred_check
      _
    $region63: #{tpu_custom_call.1} parent=1 // pred_check_branch
      %95 = sbr.rel (0) target = $region65
    $region64: #{tpu_custom_call.1} parent=1 // pred_region
      %96 = dma.done [#allocation4], 3072
    $region65: #{tpu_custom_call.1} parent=1 // pred_fallthru
      _
    // Predicated region
    $region66: #{tpu_custom_call.1} parent=1 // pred_check
      _
    $region67: #{tpu_custom_call.1} parent=1 // pred_check_branch
      %98 = sbr.rel (0) target = $region69
    $region68: #{tpu_custom_call.1} parent=1 // pred_region
      %99 = dma.done [#allocation7], 3072
    $region69: #{tpu_custom_call.1} parent=1 // pred_fallthru
      _
    // Predicated region
    $region70: #{tpu_custom_call.1} parent=1 // pred_check
      _
    $region71: #{tpu_custom_call.1} parent=1 // pred_check_branch
      %101 = sbr.rel (0) target = $region73
    $region72: #{tpu_custom_call.1} parent=1 // pred_region
      %102 = dma.done [#allocation7], 3072
    $region73: #{tpu_custom_call.1} parent=1 // pred_fallthru
      _
    // Predicated region
    $region74: #{tpu_custom_call.1} parent=1 // pred_check
      _
    $region75: #{tpu_custom_call.1} parent=1 // pred_check_branch
      %104 = sbr.rel (0) target = $region77
    $region76: #{tpu_custom_call.1} parent=1 // pred_region
      %105 = dma.done [#allocation10], 3072
    $region77: #{tpu_custom_call.1} parent=1 // pred_fallthru
      _
    %v107 = vld [vmem:[%s13] sm:$0xff]
    %v108 = vld [vmem:[%s13 + $0x8] sm:$0xff]
    %v109 = vld [vmem:[%s13 + $0x10] sm:$0xff]
    %v110 = vld [vmem:[%s13 + $0x18] sm:$0xff]
    %v111 = vld [vmem:[%s13 + $0x20] sm:$0xff]
    %v112 = vld [vmem:[%s13 + $0x28] sm:$0xff]
    %v113 = vld [vmem:[%s13 + $0x30] sm:$0xff]
    %v114 = vld [vmem:[%s13 + $0x38] sm:$0xff]
    %v115 = vld [vmem:[%s13 + $0x40] sm:$0xff]
    %v116 = vld [vmem:[%s13 + $0x48] sm:$0xff]
    %v117 = vld [vmem:[%s13 + $0x50] sm:$0xff]
    %v118 = vld [vmem:[%s13 + $0x58] sm:$0xff]
    %v119 = vld [vmem:[%s13 + $0x60] sm:$0xff]
    %v120 = vld [vmem:[%s13 + $0x68] sm:$0xff]
    %v121 = vld [vmem:[%s13 + $0x70] sm:$0xff]
    %v122 = vld [vmem:[%s13 + $0x78] sm:$0xff]
    %v123 = vld [vmem:[%s14] sm:$0xf]
    %vm124 = vcmask 1040384
    %vm125 = vsmask.f32 256
    %vm126 = vmand %vm124, %vm125
    %v127 = vld [vmem:[#allocation2] sm:$0x1]
    %v128 = vsel %vm126, 0, %v127
    %129 = vst [vmem:[#allocation2] sm:$0x1] %v128
    %vm130 = vsmask.f32 7938
    %vm131 = vmand %vm124, %vm130
    %v132 = vld [vmem:[#allocation2 + $0x8] sm:$0x1]
    %v133 = vsel %vm131, 0, %v132
    %134 = vst [vmem:[#allocation2 + $0x8] sm:$0x1] %v133
    %v135 = vld [vmem:[%s0] sm:$0xff]
    %v136 = vld [vmem:[%s0 + $0x8] sm:$0xff]
    %v137 = vpack.c.bf16 %v136, %v135
    %v139 = vunpack.c.l.b16 %v137
    %v140 = vunpack.c.h.b16 %v137
    %v141 = vpack.c.b16 %v139, %v139
    %v142 = vpack.c.b16 %v140, %v140
    %vm143 = vsmask.f32 4368
    %vm144 = vmor %vm125, %vm143
    %v146 = vshrl.u32 %v141, 16
    %v148 = vrot.slane %v146, 7
    %v149 = vshll.u32 %v141, 16
    %v151 = vor.u32 %v148, %v149
    %v152 = vrot.slane %v148, 4
    %v154 = vshrl.u32 %v142, 16
    %v156 = vrot.slane %v154, 7
    %v157 = vshll.u32 %v142, 16
    %v159 = vor.u32 %v156, %v157
    %v160 = vsel %vm144, %v152, %v159
    %v161 = vrot.slane %v156, 4
    %vm165 = vcmask 1043456
    %vm166 = vmand %vm165, %vm130
    %v167 = vld [vmem:[#allocation2] sm:$0xf]
    %v168 = vsel %vm166, %v151, %v167
    %169 = vst [vmem:[#allocation2] sm:$0xf] %v168
    %170 = vst [vmem:[#allocation2 + $0x4] sm:$0xf] %v160
    %v171 = vld [vmem:[#allocation2 + $0x8] sm:$0x1]
    %v172 = vsel %vm126, %v161, %v171
    %173 = vst [vmem:[#allocation2 + $0x8] sm:$0x1] %v172
    %v174 = vld [vmem:[#allocation2] sm:$0xf]
    %v175 = vld [vmem:[#allocation2 + $0x4] sm:$0xf]
    %v176 = vld [vmem:[#allocation3] sm:$0xf]
    %v177 = vld [vmem:[#allocation3 + $0x4] sm:$0xf]
    %v178 = vld [vmem:[#allocation3 + $0x8] sm:$0xf]
    %v179 = vld [vmem:[#allocation3 + $0xc] sm:$0xf]
    %v180 = vld [vmem:[#allocation3 + $0x10] sm:$0xf]
    %v181 = vld [vmem:[#allocation3 + $0x14] sm:$0xf]
    %v182 = vld [vmem:[#allocation3 + $0x18] sm:$0xf]
    %v183 = vld [vmem:[#allocation3 + $0x1c] sm:$0xf]
    %v184 = vld [vmem:[#allocation3 + $0x20] sm:$0xf]
    %v185 = vld [vmem:[#allocation3 + $0x24] sm:$0xf]
    %v186 = vld [vmem:[#allocation3 + $0x28] sm:$0xf]
    %v187 = vld [vmem:[#allocation3 + $0x2c] sm:$0xf]
    %v188 = vld [vmem:[#allocation3 + $0x30] sm:$0xf]
    %v189 = vld [vmem:[#allocation3 + $0x34] sm:$0xf]
    %v190 = vld [vmem:[#allocation3 + $0x38] sm:$0xf]
    %v191 = vld [vmem:[#allocation3 + $0x3c] sm:$0xf]
    %v192 = vld [vmem:[#allocation2 + $0x8] sm:$0x1]
    %s193 = scalar_lea.vmem [#allocation3], 64
    %v194 = vld [vmem:[%s193] sm:$0xf]
    %v195 = vld [vmem:[%s193 + $0x4] sm:$0xf]
    %v196 = vld [vmem:[%s193 + $0x8] sm:$0xf]
    %v197 = vld [vmem:[%s193 + $0xc] sm:$0xf]
    %v198 = vld [vmem:[%s193 + $0x10] sm:$0xf]
    %v199 = vld [vmem:[%s193 + $0x14] sm:$0xf]
    %v200 = vld [vmem:[%s193 + $0x18] sm:$0xf]
    %v201 = vld [vmem:[%s193 + $0x1c] sm:$0xf]
    %v202 = vld [vmem:[%s193 + $0x20] sm:$0xf]
    %v203 = vld [vmem:[%s193 + $0x24] sm:$0xf]
    %v204 = vld [vmem:[%s193 + $0x28] sm:$0xf]
    %v205 = vld [vmem:[%s193 + $0x2c] sm:$0xf]
    %v206 = vld [vmem:[%s193 + $0x30] sm:$0xf]
    %v207 = vld [vmem:[%s193 + $0x34] sm:$0xf]
    %v208 = vld [vmem:[%s193 + $0x38] sm:$0xf]
    %v209 = vld [vmem:[%s193 + $0x3c] sm:$0xf]
    %v213 = vunpack.c.l.b16 %v174
    %v214 = vunpack.c.l.b16 %v175
    %v215 = vunpack.c.l.b16 %v192
    %v216 = vpack.c.b16 %v214, %v213
    %v217 = vpack.c.b16 %v215, %v215
    %vm218 = vsmask.f32 7424
    %v220 = vshrl.u32 %v216, 16
    %v222 = vshll.u32 %v216, 16
    %v224 = vrot.slane %v222, 1
    %v225 = vor.u32 %v220, %v224
    %v227 = vshll.u32 %v217, 16
    %v229 = vrot.slane %v227, 1
    %v230 = vsel %vm218, %v225, %v229
    %v248 = vunpack.c.l.b16 %v194
    %v249 = vunpack.c.l.b16 %v195
    %v250 = vunpack.c.l.b16 %v196
    %v251 = vunpack.c.l.b16 %v197
    %v252 = vunpack.c.l.b16 %v198
    %v253 = vunpack.c.l.b16 %v199
    %v254 = vunpack.c.l.b16 %v200
    %v255 = vunpack.c.l.b16 %v201
    %v256 = vunpack.c.l.b16 %v202
    %v257 = vunpack.c.l.b16 %v203
    %v258 = vunpack.c.l.b16 %v204
    %v259 = vunpack.c.l.b16 %v205
    %v260 = vunpack.c.l.b16 %v206
    %v261 = vunpack.c.l.b16 %v207
    %v262 = vunpack.c.l.b16 %v208
    %v263 = vunpack.c.l.b16 %v209
    %v264 = vpack.c.b16 %v249, %v248
    %v265 = vpack.c.b16 %v251, %v250
    %v266 = vpack.c.b16 %v253, %v252
    %v267 = vpack.c.b16 %v255, %v254
    %v268 = vpack.c.b16 %v257, %v256
    %v269 = vpack.c.b16 %v259, %v258
    %v270 = vpack.c.b16 %v261, %v260
    %v271 = vpack.c.b16 %v263, %v262
    %280 = vmatprep.subr.bf16.mxu0 0
    %281 = vmatpush1.bf16.msra.mxu0 %v271
    %282 = vmatprep.subr.bf16.mxu0 0
    %283 = vmatpush1.bf16.msra.mxu0 %v270
    %284 = vmatprep.subr.bf16.mxu0 0
    %285 = vmatpush1.bf16.msra.mxu0 %v269
    %286 = vmatprep.subr.bf16.mxu0 0
    %287 = vmatpush1.bf16.msra.mxu0 %v268
    %288 = vmatprep.subr.bf16.mxu0 0
    %289 = vmatpush1.bf16.msra.mxu0 %v267
    %290 = vmatprep.subr.bf16.mxu0 0
    %291 = vmatpush1.bf16.msra.mxu0 %v266
    %292 = vmatprep.subr.bf16.mxu0 0
    %293 = vmatpush1.bf16.msra.mxu0 %v265
    %294 = vmatprep.subr.bf16.mxu0 0
    %295 = vmatpush1.bf16.msra.mxu0 %v264
    %296 = vmatprep.subr.bf16.mxu0 0
    %297 = vmatpush2.bf16.msra.mxu0 0
    %298 = vmatprep.subr.bf16.mxu0 0
    %299 = vmatpush2.bf16.msra.mxu0 0
    %300 = vmatprep.subr.bf16.mxu0 0
    %301 = vmatpush2.bf16.msra.mxu0 0
    %302 = vmatprep.subr.bf16.mxu0 0
    %303 = vmatpush2.bf16.msra.mxu0 0
    %304 = vmatprep.subr.bf16.mxu0 0
    %305 = vmatpush2.bf16.msra.mxu0 0
    %306 = vmatprep.subr.bf16.mxu0 0
    %307 = vmatpush2.bf16.msra.mxu0 0
    %308 = vmatprep.subr.bf16.mxu0 0
    %309 = vmatpush2.bf16.msra.mxu0 0
    %310 = vmatprep.subr.bf16.mxu0 0
    %311 = vmatpush2.bf16.msra.mxu0 0
    %312 = vmatprep.mubr.bf16.mxu0 0
    %313 = vmatmul.mubr.bf16.gmra.mxu0 %v230
    %v314 = vpop.f32.mrf.mxu0
    %v315 = vadd.f32 0.0, %v314
    %v316 = vpop.f32.mrf.mxu0
    %v317 = vpop.f32.mrf.mxu0
    %v318 = vadd.f32 0.0, %v317
    %v319 = vpop.f32.mrf.mxu0
    %320 = vdwg.mxu0
    %v338 = vunpack.c.l.b16 %v176
    %v339 = vunpack.c.l.b16 %v177
    %v340 = vunpack.c.l.b16 %v178
    %v341 = vunpack.c.l.b16 %v179
    %v342 = vunpack.c.l.b16 %v180
    %v343 = vunpack.c.l.b16 %v181
    %v344 = vunpack.c.l.b16 %v182
    %v345 = vunpack.c.l.b16 %v183
    %v346 = vunpack.c.l.b16 %v184
    %v347 = vunpack.c.l.b16 %v185
    %v348 = vunpack.c.l.b16 %v186
    %v349 = vunpack.c.l.b16 %v187
    %v350 = vunpack.c.l.b16 %v188
    %v351 = vunpack.c.l.b16 %v189
    %v352 = vunpack.c.l.b16 %v190
    %v353 = vunpack.c.l.b16 %v191
    %v354 = vpack.c.b16 %v339, %v338
    %v355 = vpack.c.b16 %v341, %v340
    %v356 = vpack.c.b16 %v343, %v342
    %v357 = vpack.c.b16 %v345, %v344
    %v358 = vpack.c.b16 %v347, %v346
    %v359 = vpack.c.b16 %v349, %v348
    %v360 = vpack.c.b16 %v351, %v350
    %v361 = vpack.c.b16 %v353, %v352
    %370 = vmatprep.subr.bf16.mxu0 0
    %371 = vmatpush1.bf16.msra.mxu0 %v361
    %372 = vmatprep.subr.bf16.mxu0 0
    %373 = vmatpush1.bf16.msra.mxu0 %v360
    %374 = vmatprep.subr.bf16.mxu0 0
    %375 = vmatpush1.bf16.msra.mxu0 %v359
    %376 = vmatprep.subr.bf16.mxu0 0
    %377 = vmatpush1.bf16.msra.mxu0 %v358
    %378 = vmatprep.subr.bf16.mxu0 0
    %379 = vmatpush1.bf16.msra.mxu0 %v357
    %380 = vmatprep.subr.bf16.mxu0 0
    %381 = vmatpush1.bf16.msra.mxu0 %v356
    %382 = vmatprep.subr.bf16.mxu0 0
    %383 = vmatpush1.bf16.msra.mxu0 %v355
    %384 = vmatprep.subr.bf16.mxu0 0
    %385 = vmatpush1.bf16.msra.mxu0 %v354
    %386 = vmatprep.subr.bf16.mxu0 0
    %387 = vmatpush2.bf16.msra.mxu0 0
    %388 = vmatprep.subr.bf16.mxu0 0
    %389 = vmatpush2.bf16.msra.mxu0 0
    %390 = vmatprep.subr.bf16.mxu0 0
    %391 = vmatpush2.bf16.msra.mxu0 0
    %392 = vmatprep.subr.bf16.mxu0 0
    %393 = vmatpush2.bf16.msra.mxu0 0
    %394 = vmatprep.subr.bf16.mxu0 0
    %395 = vmatpush2.bf16.msra.mxu0 0
    %396 = vmatprep.subr.bf16.mxu0 0
    %397 = vmatpush2.bf16.msra.mxu0 0
    %398 = vmatprep.subr.bf16.mxu0 0
    %399 = vmatpush2.bf16.msra.mxu0 0
    %400 = vmatprep.subr.bf16.mxu0 0
    %401 = vmatpush2.bf16.msra.mxu0 0
    %402 = vmatprep.mubr.bf16.mxu0 0
    %403 = vmatmul.mubr.bf16.gmra.mxu0 %v216
    %v404 = vpop.f32.mrf.mxu0
    %v405 = vadd.f32 %v315, %v404
    %v406 = vpop.f32.mrf.mxu0
    %v407 = vpop.f32.mrf.mxu0
    %v408 = vadd.f32 %v318, %v407
    %v409 = vpop.f32.mrf.mxu0
    %410 = vdwg.mxu0
    %v411 = vld [vmem:[#allocation2] sm:$0xe]
    %s412 = scalar_lea.vmem [#allocation3], 128
    %v413 = vld [vmem:[%s412] sm:$0xf]
    %v414 = vld [vmem:[%s412 + $0x4] sm:$0xf]
    %v415 = vld [vmem:[%s412 + $0x8] sm:$0xf]
    %v416 = vld [vmem:[%s412 + $0xc] sm:$0xf]
    %v417 = vld [vmem:[%s412 + $0x10] sm:$0xf]
    %v418 = vld [vmem:[%s412 + $0x14] sm:$0xf]
    %v419 = vld [vmem:[%s412 + $0x18] sm:$0xf]
    %v420 = vld [vmem:[%s412 + $0x1c] sm:$0xf]
    %v421 = vld [vmem:[%s412 + $0x20] sm:$0xf]
    %v422 = vld [vmem:[%s412 + $0x24] sm:$0xf]
    %v423 = vld [vmem:[%s412 + $0x28] sm:$0xf]
    %v424 = vld [vmem:[%s412 + $0x2c] sm:$0xf]
    %v425 = vld [vmem:[%s412 + $0x30] sm:$0xf]
    %v426 = vld [vmem:[%s412 + $0x34] sm:$0xf]
    %v427 = vld [vmem:[%s412 + $0x38] sm:$0xf]
    %v428 = vld [vmem:[%s412 + $0x3c] sm:$0xf]
    %v430 = vunpack.c.l.b16 %v411
    %v431 = vpack.c.b16 %v214, %v430
    %vm432 = vcmask 1046528
    %v433 = vrot.slane %v431, 1
    %v434 = vrot.slane %v217, 1
    %v435 = vsel %vm432, %v433, %v434
    %v453 = vunpack.c.l.b16 %v413
    %v454 = vunpack.c.l.b16 %v414
    %v455 = vunpack.c.l.b16 %v415
    %v456 = vunpack.c.l.b16 %v416
    %v457 = vunpack.c.l.b16 %v417
    %v458 = vunpack.c.l.b16 %v418
    %v459 = vunpack.c.l.b16 %v419
    %v460 = vunpack.c.l.b16 %v420
    %v461 = vunpack.c.l.b16 %v421
    %v462 = vunpack.c.l.b16 %v422
    %v463 = vunpack.c.l.b16 %v423
    %v464 = vunpack.c.l.b16 %v424
    %v465 = vunpack.c.l.b16 %v425
    %v466 = vunpack.c.l.b16 %v426
    %v467 = vunpack.c.l.b16 %v427
    %v468 = vunpack.c.l.b16 %v428
    %v469 = vpack.c.b16 %v454, %v453
    %v470 = vpack.c.b16 %v456, %v455
    %v471 = vpack.c.b16 %v458, %v457
    %v472 = vpack.c.b16 %v460, %v459
    %v473 = vpack.c.b16 %v462, %v461
    %v474 = vpack.c.b16 %v464, %v463
    %v475 = vpack.c.b16 %v466, %v465
    %v476 = vpack.c.b16 %v468, %v467
    %485 = vmatprep.subr.bf16.mxu0 0
    %486 = vmatpush1.bf16.msra.mxu0 %v476
    %487 = vmatprep.subr.bf16.mxu0 0
    %488 = vmatpush1.bf16.msra.mxu0 %v475
    %489 = vmatprep.subr.bf16.mxu0 0
    %490 = vmatpush1.bf16.msra.mxu0 %v474
    %491 = vmatprep.subr.bf16.mxu0 0
    %492 = vmatpush1.bf16.msra.mxu0 %v473
    %493 = vmatprep.subr.bf16.mxu0 0
    %494 = vmatpush1.bf16.msra.mxu0 %v472
    %495 = vmatprep.subr.bf16.mxu0 0
    %496 = vmatpush1.bf16.msra.mxu0 %v471
    %497 = vmatprep.subr.bf16.mxu0 0
    %498 = vmatpush1.bf16.msra.mxu0 %v470
    %499 = vmatprep.subr.bf16.mxu0 0
    %500 = vmatpush1.bf16.msra.mxu0 %v469
    %501 = vmatprep.subr.bf16.mxu0 0
    %502 = vmatpush2.bf16.msra.mxu0 0
    %503 = vmatprep.subr.bf16.mxu0 0
    %504 = vmatpush2.bf16.msra.mxu0 0
    %505 = vmatprep.subr.bf16.mxu0 0
    %506 = vmatpush2.bf16.msra.mxu0 0
    %507 = vmatprep.subr.bf16.mxu0 0
    %508 = vmatpush2.bf16.msra.mxu0 0
    %509 = vmatprep.subr.bf16.mxu0 0
    %510 = vmatpush2.bf16.msra.mxu0 0
    %511 = vmatprep.subr.bf16.mxu0 0
    %512 = vmatpush2.bf16.msra.mxu0 0
    %513 = vmatprep.subr.bf16.mxu0 0
    %514 = vmatpush2.bf16.msra.mxu0 0
    %515 = vmatprep.subr.bf16.mxu0 0
    %516 = vmatpush2.bf16.msra.mxu0 0
    %517 = vmatprep.mubr.bf16.mxu0 0
    %518 = vmatmul.mubr.bf16.gmra.mxu0 %v435
    %v519 = vpop.f32.mrf.mxu0
    %v520 = vadd.f32 0.0, %v519
    %v521 = vpop.f32.mrf.mxu0
    %v522 = vpop.f32.mrf.mxu0
    %v523 = vadd.f32 0.0, %v522
    %v524 = vpop.f32.mrf.mxu0
    %525 = vdwg.mxu0
    %v526 = vadd.f32 %v405, %v520
    %v527 = vadd.f32 %v408, %v523
    %v528 = vld [vmem:[%s2] sm:$0x1]
    %v529 = vld [vmem:[%s3] sm:$0x1]
    %v530 = vadd.f32 %v526, %v527
    %v531 = vrot.slane %v530, 4
    %v532 = vadd.f32 %v530, %v531
    %v533 = vrot.slane %v532, 2
    %v534 = vadd.f32 %v532, %v533
    %v535 = vrot.slane %v534, 1
    %v536 = vadd.f32 %v534, %v535
    %v537 = vmul.f32 %v526, %v526
    %v538 = vmul.f32 %v527, %v527
    %v539 = vadd.f32 %v537, %v538
    %v540 = vrot.slane %v539, 4
    %v541 = vadd.f32 %v539, %v540
    %v542 = vrot.slane %v541, 2
    %v543 = vadd.f32 %v541, %v542
    %v544 = vrot.slane %v543, 1
    %v545 = vadd.f32 %v543, %v544
    %vm546 = vcmask 1040384
    %v547 = vsel %vm546, %v536, %v545
    %548 = vmatprep.subr.mxu0 0.0
    %549 = vmatpush1.msra.mxu0 %v122
    %550 = vmatprep.subr.mxu0 0.0
    %551 = vmatpush1.msra.mxu0 %v121
    %552 = vmatprep.subr.mxu0 0.0
    %553 = vmatpush1.msra.mxu0 %v120
    %554 = vmatprep.subr.mxu0 0.0
    %555 = vmatpush1.msra.mxu0 %v119
    %556 = vmatprep.subr.mxu0 0.0
    %557 = vmatpush1.msra.mxu0 %v118
    %558 = vmatprep.subr.mxu0 0.0
    %559 = vmatpush1.msra.mxu0 %v117
    %560 = vmatprep.subr.mxu0 0.0
    %561 = vmatpush1.msra.mxu0 %v116
    %562 = vmatprep.subr.mxu0 0.0
    %563 = vmatpush1.msra.mxu0 %v115
    %564 = vmatprep.subr.mxu0 0.0
    %565 = vmatpush1.msra.mxu0 %v114
    %566 = vmatprep.subr.mxu0 0.0
    %567 = vmatpush1.msra.mxu0 %v113
    %568 = vmatprep.subr.mxu0 0.0
    %569 = vmatpush1.msra.mxu0 %v112
    %570 = vmatprep.subr.mxu0 0.0
    %571 = vmatpush1.msra.mxu0 %v111
    %572 = vmatprep.subr.mxu0 0.0
    %573 = vmatpush1.msra.mxu0 %v110
    %574 = vmatprep.subr.mxu0 0.0
    %575 = vmatpush1.msra.mxu0 %v109
    %576 = vmatprep.subr.mxu0 0.0
    %577 = vmatpush1.msra.mxu0 %v108
    %578 = vmatprep.subr.mxu0 0.0
    %579 = vmatpush1.msra.mxu0 %v107
    %580 = vmatprep.subr.mxu0 0.0
    %581 = vmatpush2.msra.mxu0 0.0
    %582 = vmatprep.subr.mxu0 0.0
    %583 = vmatpush2.msra.mxu0 0.0
    %584 = vmatprep.subr.mxu0 0.0
    %585 = vmatpush2.msra.mxu0 0.0
    %586 = vmatprep.subr.mxu0 0.0
    %587 = vmatpush2.msra.mxu0 0.0
    %588 = vmatprep.subr.mxu0 0.0
    %589 = vmatpush2.msra.mxu0 0.0
    %590 = vmatprep.subr.mxu0 0.0
    %591 = vmatpush2.msra.mxu0 0.0
    %592 = vmatprep.subr.mxu0 0.0
    %593 = vmatpush2.msra.mxu0 0.0
    %594 = vmatprep.subr.mxu0 0.0
    %595 = vmatpush2.msra.mxu0 0.0
    %596 = vmatprep.subr.mxu0 0.0
    %597 = vmatpush2.msra.mxu0 0.0
    %598 = vmatprep.subr.mxu0 0.0
    %599 = vmatpush2.msra.mxu0 0.0
    %600 = vmatprep.subr.mxu0 0.0
    %601 = vmatpush2.msra.mxu0 0.0
    %602 = vmatprep.subr.mxu0 0.0
    %603 = vmatpush2.msra.mxu0 0.0
    %604 = vmatprep.subr.mxu0 0.0
    %605 = vmatpush2.msra.mxu0 0.0
    %606 = vmatprep.subr.mxu0 0.0
    %607 = vmatpush2.msra.mxu0 0.0
    %608 = vmatprep.subr.mxu0 0.0
    %609 = vmatpush2.msra.mxu0 0.0
    %610 = vmatprep.subr.mxu0 0.0
    %611 = vmatpush2.msra.mxu0 0.0
    %612 = vmatprep.mubr.f32.mxu0 0.0
    %613 = vmatmul.mubr.f32.gmra.mxu0 %v547
    %v614 = vpop.f32.mrf.mxu0
    %v615 = vadd.f32 0.0, %v614
    %v616 = vpop.f32.mrf.mxu0
    %617 = vdwg.mxu0
    %v618 = vrcp.pop 512.0
    %v619 = vmul.f32 %v615, %v618
    %v620 = vmul.f32 %v619, %v619
    %v622 = vrot.slane %v620, 7
    %v624 = vsub.f32 %v619, %v622
    %v625 = vadd.f32 %v624, 1e-05
    %v626 = vrsqrt.pop %v625
    %v629 = vunpack.c.l.s4 1966171168
    %v630 = vunpack.c.0.s8 %v629
    %v631 = vlaneseq
    %v632 = vshrl.u32 %v631, 7
    %v633 = vsub.s32 %v630, %v632
    %v634 = vrot.slane %v626, %v633
    %v635 = vcombine.high %v634, %v634
    %v637 = vunpack.c.l.s4 1966171168
    %v638 = vunpack.c.0.s8 %v637
    %v639 = vlaneseq
    %v640 = vshrl.u32 %v639, 7
    %v641 = vsub.s32 %v638, %v640
    %v642 = vrot.slane %v635, %v641
    %v644 = vmul.f32 %v528, %v642
    %v645 = vmul.f32 %v619, %v644
    %v646 = vsub.f32 %v529, %v645
    %v648 = vlaneseq
    %v649 = vshrl.u32 %v648, 7
    %v650 = vsub.s32 0, %v649
    %v651 = vrot.slane %v646, %v650
    %v653 = vsel %vm546, %v644, %v651
    %vm654 = vcmask 31744
    %v656 = vsel %vm654, %v653, 0
    %vm658 = vcmask 1043456
    %v660 = vsel %vm658, %v123, 0
    %662 = vmatprep.subr.mxu0 0.0
    %663 = vmatpush1.msra.mxu0 0.0
    %664 = vmatprep.subr.mxu0 0.0
    %665 = vmatpush1.msra.mxu0 0.0
    %666 = vmatprep.subr.mxu0 0.0
    %667 = vmatpush1.msra.mxu0 0.0
    %668 = vmatprep.subr.mxu0 0.0
    %669 = vmatpush1.msra.mxu0 0.0
    %670 = vmatprep.subr.mxu0 0.0
    %671 = vmatpush1.msra.mxu0 0.0
    %672 = vmatprep.subr.mxu0 0.0
    %673 = vmatpush1.msra.mxu0 0.0
    %674 = vmatprep.subr.mxu0 0.0
    %675 = vmatpush1.msra.mxu0 0.0
    %676 = vmatprep.subr.mxu0 0.0
    %677 = vmatpush1.msra.mxu0 0.0
    %678 = vmatprep.subr.mxu0 0.0
    %679 = vmatpush1.msra.mxu0 0.0
    %680 = vmatprep.subr.mxu0 0.0
    %681 = vmatpush1.msra.mxu0 0.0
    %682 = vmatprep.subr.mxu0 0.0
    %683 = vmatpush1.msra.mxu0 0.0
    %684 = vmatprep.subr.mxu0 0.0
    %685 = vmatpush1.msra.mxu0 0.0
    %686 = vmatprep.subr.mxu0 0.0
    %687 = vmatpush1.msra.mxu0 0.0
    %688 = vmatprep.subr.mxu0 0.0
    %689 = vmatpush1.msra.mxu0 0.0
    %690 = vmatprep.subr.mxu0 0.0
    %691 = vmatpush1.msra.mxu0 0.0
    %692 = vmatprep.subr.mxu0 0.0
    %693 = vmatpush1.msra.mxu0 %v660
    %694 = vmatprep.subr.mxu0 0.0
    %695 = vmatpush2.msra.mxu0 0.0
    %696 = vmatprep.subr.mxu0 0.0
    %697 = vmatpush2.msra.mxu0 0.0
    %698 = vmatprep.subr.mxu0 0.0
    %699 = vmatpush2.msra.mxu0 0.0
    %700 = vmatprep.subr.mxu0 0.0
    %701 = vmatpush2.msra.mxu0 0.0
    %702 = vmatprep.subr.mxu0 0.0
    %703 = vmatpush2.msra.mxu0 0.0
    %704 = vmatprep.subr.mxu0 0.0
    %705 = vmatpush2.msra.mxu0 0.0
    %706 = vmatprep.subr.mxu0 0.0
    %707 = vmatpush2.msra.mxu0 0.0
    %708 = vmatprep.subr.mxu0 0.0
    %709 = vmatpush2.msra.mxu0 0.0
    %710 = vmatprep.subr.mxu0 0.0
    %711 = vmatpush2.msra.mxu0 0.0
    %712 = vmatprep.subr.mxu0 0.0
    %713 = vmatpush2.msra.mxu0 0.0
    %714 = vmatprep.subr.mxu0 0.0
    %715 = vmatpush2.msra.mxu0 0.0
    %716 = vmatprep.subr.mxu0 0.0
    %717 = vmatpush2.msra.mxu0 0.0
    %718 = vmatprep.subr.mxu0 0.0
    %719 = vmatpush2.msra.mxu0 0.0
    %720 = vmatprep.subr.mxu0 0.0
    %721 = vmatpush2.msra.mxu0 0.0
    %722 = vmatprep.subr.mxu0 0.0
    %723 = vmatpush2.msra.mxu0 0.0
    %724 = vmatprep.subr.mxu0 0.0
    %725 = vmatpush2.msra.mxu0 0.0
    %726 = vmatprep.mubr.f32.mxu0 0.0
    %727 = vmatmul.mubr.f32.gmra.mxu0 %v656
    %v728 = vpop.f32.mrf.mxu0
    %v729 = vadd.f32 0.0, %v728
    %v730 = vpop.f32.mrf.mxu0
    %731 = vdwg.mxu0
    %v732 = vlaneseq
    %v733 = vshrl.u32 %v732, 7
    %v734 = vsub.s32 0, %v733
    %v735 = vrot.slane %v729, %v734
    %v736 = vmul.f32 %v526, %v735
    %v737 = vmul.f32 %v527, %v735
    %v738 = vlaneseq
    %v739 = vshrl.u32 %v738, 7
    %v740 = vsub.s32 1, %v739
    %v741 = vrot.slane %v729, %v740
    %v742 = vadd.f32 %v736, %v741
    %v743 = vadd.f32 %v737, %v741
    %v744 = vmax.f32 %v742, 0.0
    %v745 = vmax.f32 %v743, 0.0
    %v746 = vpack.c.bf16 %v745, %v744
    %v748 = vunpack.c.l.b16 %v746
    %v749 = vunpack.c.h.b16 %v746
    %v750 = vpack.c.b16 %v748, %v748
    %v751 = vpack.c.b16 %v749, %v749
    %v753 = vshrl.u32 %v750, 16
    %v755 = vrot.slane %v753, 7
    %v756 = vshll.u32 %v750, 16
    %v758 = vor.u32 %v755, %v756
    %v759 = vrot.slane %v755, 4
    %v761 = vshrl.u32 %v751, 16
    %v763 = vrot.slane %v761, 7
    %v764 = vshll.u32 %v751, 16
    %v766 = vor.u32 %v763, %v764
    %v767 = vsel %vm144, %v759, %v766
    %v768 = vrot.slane %v763, 4
    %v772 = vld [vmem:[#allocation2] sm:$0xf]
    %v773 = vsel %vm166, %v758, %v772
    %774 = vst [vmem:[#allocation2] sm:$0xf] %v773
    %775 = vst [vmem:[#allocation2 + $0x4] sm:$0xf] %v767
    %v776 = vld [vmem:[#allocation2 + $0x8] sm:$0x1]
    %v777 = vsel %vm126, %v768, %v776
    %778 = vst [vmem:[#allocation2 + $0x8] sm:$0x1] %v777
    %v779 = vld [vmem:[#allocation2] sm:$0xf]
    %v780 = vld [vmem:[#allocation2 + $0x4] sm:$0xf]
    %v781 = vld [vmem:[#allocation6] sm:$0xf]
    %v782 = vld [vmem:[#allocation6 + $0x4] sm:$0xf]
    %v783 = vld [vmem:[#allocation6 + $0x8] sm:$0xf]
    %v784 = vld [vmem:[#allocation6 + $0xc] sm:$0xf]
    %v785 = vld [vmem:[#allocation6 + $0x10] sm:$0xf]
    %v786 = vld [vmem:[#allocation6 + $0x14] sm:$0xf]
    %v787 = vld [vmem:[#allocation6 + $0x18] sm:$0xf]
    %v788 = vld [vmem:[#allocation6 + $0x1c] sm:$0xf]
    %v789 = vld [vmem:[#allocation6 + $0x20] sm:$0xf]
    %v790 = vld [vmem:[#allocation6 + $0x24] sm:$0xf]
    %v791 = vld [vmem:[#allocation6 + $0x28] sm:$0xf]
    %v792 = vld [vmem:[#allocation6 + $0x2c] sm:$0xf]
    %v793 = vld [vmem:[#allocation6 + $0x30] sm:$0xf]
    %v794 = vld [vmem:[#allocation6 + $0x34] sm:$0xf]
    %v795 = vld [vmem:[#allocation6 + $0x38] sm:$0xf]
    %v796 = vld [vmem:[#allocation6 + $0x3c] sm:$0xf]
    %v797 = vld [vmem:[#allocation2 + $0x8] sm:$0x1]
    %s798 = scalar_lea.vmem [#allocation6], 64
    %v799 = vld [vmem:[%s798] sm:$0xf]
    %v800 = vld [vmem:[%s798 + $0x4] sm:$0xf]
    %v801 = vld [vmem:[%s798 + $0x8] sm:$0xf]
    %v802 = vld [vmem:[%s798 + $0xc] sm:$0xf]
    %v803 = vld [vmem:[%s798 + $0x10] sm:$0xf]
    %v804 = vld [vmem:[%s798 + $0x14] sm:$0xf]
    %v805 = vld [vmem:[%s798 + $0x18] sm:$0xf]
    %v806 = vld [vmem:[%s798 + $0x1c] sm:$0xf]
    %v807 = vld [vmem:[%s798 + $0x20] sm:$0xf]
    %v808 = vld [vmem:[%s798 + $0x24] sm:$0xf]
    %v809 = vld [vmem:[%s798 + $0x28] sm:$0xf]
    %v810 = vld [vmem:[%s798 + $0x2c] sm:$0xf]
    %v811 = vld [vmem:[%s798 + $0x30] sm:$0xf]
    %v812 = vld [vmem:[%s798 + $0x34] sm:$0xf]
    %v813 = vld [vmem:[%s798 + $0x38] sm:$0xf]
    %v814 = vld [vmem:[%s798 + $0x3c] sm:$0xf]
    %v818 = vunpack.c.l.b16 %v779
    %v819 = vunpack.c.l.b16 %v780
    %v820 = vunpack.c.l.b16 %v797
    %v821 = vpack.c.b16 %v819, %v818
    %v822 = vpack.c.b16 %v820, %v820
    %v824 = vshrl.u32 %v821, 16
    %v826 = vshll.u32 %v821, 16
    %v828 = vrot.slane %v826, 1
    %v829 = vor.u32 %v824, %v828
    %v831 = vshll.u32 %v822, 16
    %v833 = vrot.slane %v831, 1
    %v834 = vsel %vm218, %v829, %v833
    %v852 = vunpack.c.l.b16 %v799
    %v853 = vunpack.c.l.b16 %v800
    %v854 = vunpack.c.l.b16 %v801
    %v855 = vunpack.c.l.b16 %v802
    %v856 = vunpack.c.l.b16 %v803
    %v857 = vunpack.c.l.b16 %v804
    %v858 = vunpack.c.l.b16 %v805
    %v859 = vunpack.c.l.b16 %v806
    %v860 = vunpack.c.l.b16 %v807
    %v861 = vunpack.c.l.b16 %v808
    %v862 = vunpack.c.l.b16 %v809
    %v863 = vunpack.c.l.b16 %v810
    %v864 = vunpack.c.l.b16 %v811
    %v865 = vunpack.c.l.b16 %v812
    %v866 = vunpack.c.l.b16 %v813
    %v867 = vunpack.c.l.b16 %v814
    %v868 = vpack.c.b16 %v853, %v852
    %v869 = vpack.c.b16 %v855, %v854
    %v870 = vpack.c.b16 %v857, %v856
    %v871 = vpack.c.b16 %v859, %v858
    %v872 = vpack.c.b16 %v861, %v860
    %v873 = vpack.c.b16 %v863, %v862
    %v874 = vpack.c.b16 %v865, %v864
    %v875 = vpack.c.b16 %v867, %v866
    %884 = vmatprep.subr.bf16.mxu0 0
    %885 = vmatpush1.bf16.msra.mxu0 %v875
    %886 = vmatprep.subr.bf16.mxu0 0
    %887 = vmatpush1.bf16.msra.mxu0 %v874
    %888 = vmatprep.subr.bf16.mxu0 0
    %889 = vmatpush1.bf16.msra.mxu0 %v873
    %890 = vmatprep.subr.bf16.mxu0 0
    %891 = vmatpush1.bf16.msra.mxu0 %v872
    %892 = vmatprep.subr.bf16.mxu0 0
    %893 = vmatpush1.bf16.msra.mxu0 %v871
    %894 = vmatprep.subr.bf16.mxu0 0
    %895 = vmatpush1.bf16.msra.mxu0 %v870
    %896 = vmatprep.subr.bf16.mxu0 0
    %897 = vmatpush1.bf16.msra.mxu0 %v869
    %898 = vmatprep.subr.bf16.mxu0 0
    %899 = vmatpush1.bf16.msra.mxu0 %v868
    %900 = vmatprep.subr.bf16.mxu0 0
    %901 = vmatpush2.bf16.msra.mxu0 0
    %902 = vmatprep.subr.bf16.mxu0 0
    %903 = vmatpush2.bf16.msra.mxu0 0
    %904 = vmatprep.subr.bf16.mxu0 0
    %905 = vmatpush2.bf16.msra.mxu0 0
    %906 = vmatprep.subr.bf16.mxu0 0
    %907 = vmatpush2.bf16.msra.mxu0 0
    %908 = vmatprep.subr.bf16.mxu0 0
    %909 = vmatpush2.bf16.msra.mxu0 0
    %910 = vmatprep.subr.bf16.mxu0 0
    %911 = vmatpush2.bf16.msra.mxu0 0
    %912 = vmatprep.subr.bf16.mxu0 0
    %913 = vmatpush2.bf16.msra.mxu0 0
    %914 = vmatprep.subr.bf16.mxu0 0
    %915 = vmatpush2.bf16.msra.mxu0 0
    %916 = vmatprep.mubr.bf16.mxu0 0
    %917 = vmatmul.mubr.bf16.gmra.mxu0 %v834
    %v918 = vpop.f32.mrf.mxu0
    %v919 = vadd.f32 0.0, %v918
    %v920 = vpop.f32.mrf.mxu0
    %v921 = vpop.f32.mrf.mxu0
    %v922 = vadd.f32 0.0, %v921
    %v923 = vpop.f32.mrf.mxu0
    %924 = vdwg.mxu0
    %v942 = vunpack.c.l.b16 %v781
    %v943 = vunpack.c.l.b16 %v782
    %v944 = vunpack.c.l.b16 %v783
    %v945 = vunpack.c.l.b16 %v784
    %v946 = vunpack.c.l.b16 %v785
    %v947 = vunpack.c.l.b16 %v786
    %v948 = vunpack.c.l.b16 %v787
    %v949 = vunpack.c.l.b16 %v788
    %v950 = vunpack.c.l.b16 %v789
    %v951 = vunpack.c.l.b16 %v790
    %v952 = vunpack.c.l.b16 %v791
    %v953 = vunpack.c.l.b16 %v792
    %v954 = vunpack.c.l.b16 %v793
    %v955 = vunpack.c.l.b16 %v794
    %v956 = vunpack.c.l.b16 %v795
    %v957 = vunpack.c.l.b16 %v796
    %v958 = vpack.c.b16 %v943, %v942
    %v959 = vpack.c.b16 %v945, %v944
    %v960 = vpack.c.b16 %v947, %v946
    %v961 = vpack.c.b16 %v949, %v948
    %v962 = vpack.c.b16 %v951, %v950
    %v963 = vpack.c.b16 %v953, %v952
    %v964 = vpack.c.b16 %v955, %v954
    %v965 = vpack.c.b16 %v957, %v956
    %974 = vmatprep.subr.bf16.mxu0 0
    %975 = vmatpush1.bf16.msra.mxu0 %v965
    %976 = vmatprep.subr.bf16.mxu0 0
    %977 = vmatpush1.bf16.msra.mxu0 %v964
    %978 = vmatprep.subr.bf16.mxu0 0
    %979 = vmatpush1.bf16.msra.mxu0 %v963
    %980 = vmatprep.subr.bf16.mxu0 0
    %981 = vmatpush1.bf16.msra.mxu0 %v962
    %982 = vmatprep.subr.bf16.mxu0 0
    %983 = vmatpush1.bf16.msra.mxu0 %v961
    %984 = vmatprep.subr.bf16.mxu0 0
    %985 = vmatpush1.bf16.msra.mxu0 %v960
    %986 = vmatprep.subr.bf16.mxu0 0
    %987 = vmatpush1.bf16.msra.mxu0 %v959
    %988 = vmatprep.subr.bf16.mxu0 0
    %989 = vmatpush1.bf16.msra.mxu0 %v958
    %990 = vmatprep.subr.bf16.mxu0 0
    %991 = vmatpush2.bf16.msra.mxu0 0
    %992 = vmatprep.subr.bf16.mxu0 0
    %993 = vmatpush2.bf16.msra.mxu0 0
    %994 = vmatprep.subr.bf16.mxu0 0
    %995 = vmatpush2.bf16.msra.mxu0 0
    %996 = vmatprep.subr.bf16.mxu0 0
    %997 = vmatpush2.bf16.msra.mxu0 0
    %998 = vmatprep.subr.bf16.mxu0 0
    %999 = vmatpush2.bf16.msra.mxu0 0
    %1000 = vmatprep.subr.bf16.mxu0 0
    %1001 = vmatpush2.bf16.msra.mxu0 0
    %1002 = vmatprep.subr.bf16.mxu0 0
    %1003 = vmatpush2.bf16.msra.mxu0 0
    %1004 = vmatprep.subr.bf16.mxu0 0
    %1005 = vmatpush2.bf16.msra.mxu0 0
    %1006 = vmatprep.mubr.bf16.mxu0 0
    %1007 = vmatmul.mubr.bf16.gmra.mxu0 %v821
    %v1008 = vpop.f32.mrf.mxu0
    %v1009 = vadd.f32 %v919, %v1008
    %v1010 = vpop.f32.mrf.mxu0
    %v1011 = vpop.f32.mrf.mxu0
    %v1012 = vadd.f32 %v922, %v1011
    %v1013 = vpop.f32.mrf.mxu0
    %1014 = vdwg.mxu0
    %v1015 = vld [vmem:[#allocation2] sm:$0xe]
    %s1016 = scalar_lea.vmem [#allocation6], 128
    %v1017 = vld [vmem:[%s1016] sm:$0xf]
    %v1018 = vld [vmem:[%s1016 + $0x4] sm:$0xf]
    %v1019 = vld [vmem:[%s1016 + $0x8] sm:$0xf]
    %v1020 = vld [vmem:[%s1016 + $0xc] sm:$0xf]
    %v1021 = vld [vmem:[%s1016 + $0x10] sm:$0xf]
    %v1022 = vld [vmem:[%s1016 + $0x14] sm:$0xf]
    %v1023 = vld [vmem:[%s1016 + $0x18] sm:$0xf]
    %v1024 = vld [vmem:[%s1016 + $0x1c] sm:$0xf]
    %v1025 = vld [vmem:[%s1016 + $0x20] sm:$0xf]
    %v1026 = vld [vmem:[%s1016 + $0x24] sm:$0xf]
    %v1027 = vld [vmem:[%s1016 + $0x28] sm:$0xf]
    %v1028 = vld [vmem:[%s1016 + $0x2c] sm:$0xf]
    %v1029 = vld [vmem:[%s1016 + $0x30] sm:$0xf]
    %v1030 = vld [vmem:[%s1016 + $0x34] sm:$0xf]
    %v1031 = vld [vmem:[%s1016 + $0x38] sm:$0xf]
    %v1032 = vld [vmem:[%s1016 + $0x3c] sm:$0xf]
    %v1034 = vunpack.c.l.b16 %v1015
    %v1035 = vpack.c.b16 %v819, %v1034
    %v1036 = vrot.slane %v1035, 1
    %v1037 = vrot.slane %v822, 1
    %v1038 = vsel %vm432, %v1036, %v1037
    %v1056 = vunpack.c.l.b16 %v1017
    %v1057 = vunpack.c.l.b16 %v1018
    %v1058 = vunpack.c.l.b16 %v1019
    %v1059 = vunpack.c.l.b16 %v1020
    %v1060 = vunpack.c.l.b16 %v1021
    %v1061 = vunpack.c.l.b16 %v1022
    %v1062 = vunpack.c.l.b16 %v1023
    %v1063 = vunpack.c.l.b16 %v1024
    %v1064 = vunpack.c.l.b16 %v1025
    %v1065 = vunpack.c.l.b16 %v1026
    %v1066 = vunpack.c.l.b16 %v1027
    %v1067 = vunpack.c.l.b16 %v1028
    %v1068 = vunpack.c.l.b16 %v1029
    %v1069 = vunpack.c.l.b16 %v1030
    %v1070 = vunpack.c.l.b16 %v1031
    %v1071 = vunpack.c.l.b16 %v1032
    %v1072 = vpack.c.b16 %v1057, %v1056
    %v1073 = vpack.c.b16 %v1059, %v1058
    %v1074 = vpack.c.b16 %v1061, %v1060
    %v1075 = vpack.c.b16 %v1063, %v1062
    %v1076 = vpack.c.b16 %v1065, %v1064
    %v1077 = vpack.c.b16 %v1067, %v1066
    %v1078 = vpack.c.b16 %v1069, %v1068
    %v1079 = vpack.c.b16 %v1071, %v1070
    %1088 = vmatprep.subr.bf16.mxu0 0
    %1089 = vmatpush1.bf16.msra.mxu0 %v1079
    %1090 = vmatprep.subr.bf16.mxu0 0
    %1091 = vmatpush1.bf16.msra.mxu0 %v1078
    %1092 = vmatprep.subr.bf16.mxu0 0
    %1093 = vmatpush1.bf16.msra.mxu0 %v1077
    %1094 = vmatprep.subr.bf16.mxu0 0
    %1095 = vmatpush1.bf16.msra.mxu0 %v1076
    %1096 = vmatprep.subr.bf16.mxu0 0
    %1097 = vmatpush1.bf16.msra.mxu0 %v1075
    %1098 = vmatprep.subr.bf16.mxu0 0
    %1099 = vmatpush1.bf16.msra.mxu0 %v1074
    %1100 = vmatprep.subr.bf16.mxu0 0
    %1101 = vmatpush1.bf16.msra.mxu0 %v1073
    %1102 = vmatprep.subr.bf16.mxu0 0
    %1103 = vmatpush1.bf16.msra.mxu0 %v1072
    %1104 = vmatprep.subr.bf16.mxu0 0
    %1105 = vmatpush2.bf16.msra.mxu0 0
    %1106 = vmatprep.subr.bf16.mxu0 0
    %1107 = vmatpush2.bf16.msra.mxu0 0
    %1108 = vmatprep.subr.bf16.mxu0 0
    %1109 = vmatpush2.bf16.msra.mxu0 0
    %1110 = vmatprep.subr.bf16.mxu0 0
    %1111 = vmatpush2.bf16.msra.mxu0 0
    %1112 = vmatprep.subr.bf16.mxu0 0
    %1113 = vmatpush2.bf16.msra.mxu0 0
    %1114 = vmatprep.subr.bf16.mxu0 0
    %1115 = vmatpush2.bf16.msra.mxu0 0
    %1116 = vmatprep.subr.bf16.mxu0 0
    %1117 = vmatpush2.bf16.msra.mxu0 0
    %1118 = vmatprep.subr.bf16.mxu0 0
    %1119 = vmatpush2.bf16.msra.mxu0 0
    %1120 = vmatprep.mubr.bf16.mxu0 0
    %1121 = vmatmul.mubr.bf16.gmra.mxu0 %v1038
    %v1122 = vpop.f32.mrf.mxu0
    %v1123 = vadd.f32 0.0, %v1122
    %v1124 = vpop.f32.mrf.mxu0
    %v1125 = vpop.f32.mrf.mxu0
    %v1126 = vadd.f32 0.0, %v1125
    %v1127 = vpop.f32.mrf.mxu0
    %1128 = vdwg.mxu0
    %v1129 = vadd.f32 %v1009, %v1123
    %v1130 = vadd.f32 %v1012, %v1126
    %v1131 = vld [vmem:[%s5] sm:$0x1]
    %v1132 = vld [vmem:[%s6] sm:$0x1]
    %v1133 = vadd.f32 %v1129, %v1130
    %v1134 = vrot.slane %v1133, 4
    %v1135 = vadd.f32 %v1133, %v1134
    %v1136 = vrot.slane %v1135, 2
    %v1137 = vadd.f32 %v1135, %v1136
    %v1138 = vrot.slane %v1137, 1
    %v1139 = vadd.f32 %v1137, %v1138
    %v1140 = vmul.f32 %v1129, %v1129
    %v1141 = vmul.f32 %v1130, %v1130
    %v1142 = vadd.f32 %v1140, %v1141
    %v1143 = vrot.slane %v1142, 4
    %v1144 = vadd.f32 %v1142, %v1143
    %v1145 = vrot.slane %v1144, 2
    %v1146 = vadd.f32 %v1144, %v1145
    %v1147 = vrot.slane %v1146, 1
    %v1148 = vadd.f32 %v1146, %v1147
    %v1149 = vsel %vm546, %v1139, %v1148
    %1150 = vmatprep.subr.mxu0 0.0
    %1151 = vmatpush1.msra.mxu0 %v122
    %1152 = vmatprep.subr.mxu0 0.0
    %1153 = vmatpush1.msra.mxu0 %v121
    %1154 = vmatprep.subr.mxu0 0.0
    %1155 = vmatpush1.msra.mxu0 %v120
    %1156 = vmatprep.subr.mxu0 0.0
    %1157 = vmatpush1.msra.mxu0 %v119
    %1158 = vmatprep.subr.mxu0 0.0
    %1159 = vmatpush1.msra.mxu0 %v118
    %1160 = vmatprep.subr.mxu0 0.0
    %1161 = vmatpush1.msra.mxu0 %v117
    %1162 = vmatprep.subr.mxu0 0.0
    %1163 = vmatpush1.msra.mxu0 %v116
    %1164 = vmatprep.subr.mxu0 0.0
    %1165 = vmatpush1.msra.mxu0 %v115
    %1166 = vmatprep.subr.mxu0 0.0
    %1167 = vmatpush1.msra.mxu0 %v114
    %1168 = vmatprep.subr.mxu0 0.0
    %1169 = vmatpush1.msra.mxu0 %v113
    %1170 = vmatprep.subr.mxu0 0.0
    %1171 = vmatpush1.msra.mxu0 %v112
    %1172 = vmatprep.subr.mxu0 0.0
    %1173 = vmatpush1.msra.mxu0 %v111
    %1174 = vmatprep.subr.mxu0 0.0
    %1175 = vmatpush1.msra.mxu0 %v110
    %1176 = vmatprep.subr.mxu0 0.0
    %1177 = vmatpush1.msra.mxu0 %v109
    %1178 = vmatprep.subr.mxu0 0.0
    %1179 = vmatpush1.msra.mxu0 %v108
    %1180 = vmatprep.subr.mxu0 0.0
    %1181 = vmatpush1.msra.mxu0 %v107
    %1182 = vmatprep.subr.mxu0 0.0
    %1183 = vmatpush2.msra.mxu0 0.0
    %1184 = vmatprep.subr.mxu0 0.0
    %1185 = vmatpush2.msra.mxu0 0.0
    %1186 = vmatprep.subr.mxu0 0.0
    %1187 = vmatpush2.msra.mxu0 0.0
    %1188 = vmatprep.subr.mxu0 0.0
    %1189 = vmatpush2.msra.mxu0 0.0
    %1190 = vmatprep.subr.mxu0 0.0
    %1191 = vmatpush2.msra.mxu0 0.0
    %1192 = vmatprep.subr.mxu0 0.0
    %1193 = vmatpush2.msra.mxu0 0.0
    %1194 = vmatprep.subr.mxu0 0.0
    %1195 = vmatpush2.msra.mxu0 0.0
    %1196 = vmatprep.subr.mxu0 0.0
    %1197 = vmatpush2.msra.mxu0 0.0
    %1198 = vmatprep.subr.mxu0 0.0
    %1199 = vmatpush2.msra.mxu0 0.0
    %1200 = vmatprep.subr.mxu0 0.0
    %1201 = vmatpush2.msra.mxu0 0.0
    %1202 = vmatprep.subr.mxu0 0.0
    %1203 = vmatpush2.msra.mxu0 0.0
    %1204 = vmatprep.subr.mxu0 0.0
    %1205 = vmatpush2.msra.mxu0 0.0
    %1206 = vmatprep.subr.mxu0 0.0
    %1207 = vmatpush2.msra.mxu0 0.0
    %1208 = vmatprep.subr.mxu0 0.0
    %1209 = vmatpush2.msra.mxu0 0.0
    %1210 = vmatprep.subr.mxu0 0.0
    %1211 = vmatpush2.msra.mxu0 0.0
    %1212 = vmatprep.subr.mxu0 0.0
    %1213 = vmatpush2.msra.mxu0 0.0
    %1214 = vmatprep.mubr.f32.mxu0 0.0
    %1215 = vmatmul.mubr.f32.gmra.mxu0 %v1149
    %v1216 = vpop.f32.mrf.mxu0
    %v1217 = vadd.f32 0.0, %v1216
    %v1218 = vpop.f32.mrf.mxu0
    %1219 = vdwg.mxu0
    %v1220 = vmul.f32 %v1217, %v618
    %v1221 = vmul.f32 %v1220, %v1220
    %v1223 = vrot.slane %v1221, 7
    %v1225 = vsub.f32 %v1220, %v1223
    %v1226 = vadd.f32 %v1225, 1e-05
    %v1227 = vrsqrt.pop %v1226
    %v1230 = vunpack.c.l.s4 1966171168
    %v1231 = vunpack.c.0.s8 %v1230
    %v1232 = vlaneseq
    %v1233 = vshrl.u32 %v1232, 7
    %v1234 = vsub.s32 %v1231, %v1233
    %v1235 = vrot.slane %v1227, %v1234
    %v1236 = vcombine.high %v1235, %v1235
    %v1238 = vunpack.c.l.s4 1966171168
    %v1239 = vunpack.c.0.s8 %v1238
    %v1240 = vlaneseq
    %v1241 = vshrl.u32 %v1240, 7
    %v1242 = vsub.s32 %v1239, %v1241
    %v1243 = vrot.slane %v1236, %v1242
    %v1245 = vmul.f32 %v1131, %v1243
    %v1246 = vmul.f32 %v1220, %v1245
    %v1247 = vsub.f32 %v1132, %v1246
    %v1249 = vlaneseq
    %v1250 = vshrl.u32 %v1249, 7
    %v1251 = vsub.s32 0, %v1250
    %v1252 = vrot.slane %v1247, %v1251
    %v1254 = vsel %vm546, %v1245, %v1252
    %v1256 = vsel %vm654, %v1254, 0
    %1258 = vmatprep.subr.mxu0 0.0
    %1259 = vmatpush1.msra.mxu0 0.0
    %1260 = vmatprep.subr.mxu0 0.0
    %1261 = vmatpush1.msra.mxu0 0.0
    %1262 = vmatprep.subr.mxu0 0.0
    %1263 = vmatpush1.msra.mxu0 0.0
    %1264 = vmatprep.subr.mxu0 0.0
    %1265 = vmatpush1.msra.mxu0 0.0
    %1266 = vmatprep.subr.mxu0 0.0
    %1267 = vmatpush1.msra.mxu0 0.0
    %1268 = vmatprep.subr.mxu0 0.0
    %1269 = vmatpush1.msra.mxu0 0.0
    %1270 = vmatprep.subr.mxu0 0.0
    %1271 = vmatpush1.msra.mxu0 0.0
    %1272 = vmatprep.subr.mxu0 0.0
    %1273 = vmatpush1.msra.mxu0 0.0
    %1274 = vmatprep.subr.mxu0 0.0
    %1275 = vmatpush1.msra.mxu0 0.0
    %1276 = vmatprep.subr.mxu0 0.0
    %1277 = vmatpush1.msra.mxu0 0.0
    %1278 = vmatprep.subr.mxu0 0.0
    %1279 = vmatpush1.msra.mxu0 0.0
    %1280 = vmatprep.subr.mxu0 0.0
    %1281 = vmatpush1.msra.mxu0 0.0
    %1282 = vmatprep.subr.mxu0 0.0
    %1283 = vmatpush1.msra.mxu0 0.0
    %1284 = vmatprep.subr.mxu0 0.0
    %1285 = vmatpush1.msra.mxu0 0.0
    %1286 = vmatprep.subr.mxu0 0.0
    %1287 = vmatpush1.msra.mxu0 0.0
    %1288 = vmatprep.subr.mxu0 0.0
    %1289 = vmatpush1.msra.mxu0 %v660
    %1290 = vmatprep.subr.mxu0 0.0
    %1291 = vmatpush2.msra.mxu0 0.0
    %1292 = vmatprep.subr.mxu0 0.0
    %1293 = vmatpush2.msra.mxu0 0.0
    %1294 = vmatprep.subr.mxu0 0.0
    %1295 = vmatpush2.msra.mxu0 0.0
    %1296 = vmatprep.subr.mxu0 0.0
    %1297 = vmatpush2.msra.mxu0 0.0
    %1298 = vmatprep.subr.mxu0 0.0
    %1299 = vmatpush2.msra.mxu0 0.0
    %1300 = vmatprep.subr.mxu0 0.0
    %1301 = vmatpush2.msra.mxu0 0.0
    %1302 = vmatprep.subr.mxu0 0.0
    %1303 = vmatpush2.msra.mxu0 0.0
    %1304 = vmatprep.subr.mxu0 0.0
    %1305 = vmatpush2.msra.mxu0 0.0
    %1306 = vmatprep.subr.mxu0 0.0
    %1307 = vmatpush2.msra.mxu0 0.0
    %1308 = vmatprep.subr.mxu0 0.0
    %1309 = vmatpush2.msra.mxu0 0.0
    %1310 = vmatprep.subr.mxu0 0.0
    %1311 = vmatpush2.msra.mxu0 0.0
    %1312 = vmatprep.subr.mxu0 0.0
    %1313 = vmatpush2.msra.mxu0 0.0
    %1314 = vmatprep.subr.mxu0 0.0
    %1315 = vmatpush2.msra.mxu0 0.0
    %1316 = vmatprep.subr.mxu0 0.0
    %1317 = vmatpush2.msra.mxu0 0.0
    %1318 = vmatprep.subr.mxu0 0.0
    %1319 = vmatpush2.msra.mxu0 0.0
    %1320 = vmatprep.subr.mxu0 0.0
    %1321 = vmatpush2.msra.mxu0 0.0
    %1322 = vmatprep.mubr.f32.mxu0 0.0
    %1323 = vmatmul.mubr.f32.gmra.mxu0 %v1256
    %v1324 = vpop.f32.mrf.mxu0
    %v1325 = vadd.f32 0.0, %v1324
    %v1326 = vpop.f32.mrf.mxu0
    %1327 = vdwg.mxu0
    %v1328 = vlaneseq
    %v1329 = vshrl.u32 %v1328, 7
    %v1330 = vsub.s32 0, %v1329
    %v1331 = vrot.slane %v1325, %v1330
    %v1332 = vmul.f32 %v1129, %v1331
    %v1333 = vmul.f32 %v1130, %v1331
    %v1334 = vlaneseq
    %v1335 = vshrl.u32 %v1334, 7
    %v1336 = vsub.s32 1, %v1335
    %v1337 = vrot.slane %v1325, %v1336
    %v1338 = vadd.f32 %v1332, %v1337
    %v1339 = vadd.f32 %v1333, %v1337
    %v1340 = vadd.f32 %v1338, %v135
    %v1341 = vadd.f32 %v1339, %v136
    %v1342 = vmax.f32 %v1340, 0.0
    %v1343 = vmax.f32 %v1341, 0.0
    %v1344 = vpack.c.bf16 %v1343, %v1342
    %v1346 = vunpack.c.l.b16 %v1344
    %v1347 = vunpack.c.h.b16 %v1344
    %v1348 = vpack.c.b16 %v1346, %v1346
    %v1349 = vpack.c.b16 %v1347, %v1347
    %v1351 = vshrl.u32 %v1348, 16
    %v1353 = vrot.slane %v1351, 7
    %v1354 = vshll.u32 %v1348, 16
    %v1356 = vor.u32 %v1353, %v1354
    %v1357 = vrot.slane %v1353, 4
    %v1359 = vshrl.u32 %v1349, 16
    %v1361 = vrot.slane %v1359, 7
    %v1362 = vshll.u32 %v1349, 16
    %v1364 = vor.u32 %v1361, %v1362
    %v1365 = vsel %vm144, %v1357, %v1364
    %v1366 = vrot.slane %v1361, 4
    %v1370 = vld [vmem:[#allocation2] sm:$0xf]
    %v1371 = vsel %vm166, %v1356, %v1370
    %1372 = vst [vmem:[#allocation2] sm:$0xf] %v1371
    %1373 = vst [vmem:[#allocation2 + $0x4] sm:$0xf] %v1365
    %v1374 = vld [vmem:[#allocation2 + $0x8] sm:$0x1]
    %v1375 = vsel %vm126, %v1366, %v1374
    %1376 = vst [vmem:[#allocation2 + $0x8] sm:$0x1] %v1375
    %v1377 = vld [vmem:[#allocation2] sm:$0xf]
    %v1378 = vld [vmem:[#allocation2 + $0x4] sm:$0xf]
    %v1379 = vld [vmem:[#allocation8] sm:$0xf]
    %v1380 = vld [vmem:[#allocation8 + $0x4] sm:$0xf]
    %v1381 = vld [vmem:[#allocation8 + $0x8] sm:$0xf]
    %v1382 = vld [vmem:[#allocation8 + $0xc] sm:$0xf]
    %v1383 = vld [vmem:[#allocation8 + $0x10] sm:$0xf]
    %v1384 = vld [vmem:[#allocation8 + $0x14] sm:$0xf]
    %v1385 = vld [vmem:[#allocation8 + $0x18] sm:$0xf]
    %v1386 = vld [vmem:[#allocation8 + $0x1c] sm:$0xf]
    %v1387 = vld [vmem:[#allocation8 + $0x20] sm:$0xf]
    %v1388 = vld [vmem:[#allocation8 + $0x24] sm:$0xf]
    %v1389 = vld [vmem:[#allocation8 + $0x28] sm:$0xf]
    %v1390 = vld [vmem:[#allocation8 + $0x2c] sm:$0xf]
    %v1391 = vld [vmem:[#allocation8 + $0x30] sm:$0xf]
    %v1392 = vld [vmem:[#allocation8 + $0x34] sm:$0xf]
    %v1393 = vld [vmem:[#allocation8 + $0x38] sm:$0xf]
    %v1394 = vld [vmem:[#allocation8 + $0x3c] sm:$0xf]
    %v1395 = vld [vmem:[#allocation2 + $0x8] sm:$0x1]
    %s1396 = scalar_lea.vmem [#allocation8], 64
    %v1397 = vld [vmem:[%s1396] sm:$0xf]
    %v1398 = vld [vmem:[%s1396 + $0x4] sm:$0xf]
    %v1399 = vld [vmem:[%s1396 + $0x8] sm:$0xf]
    %v1400 = vld [vmem:[%s1396 + $0xc] sm:$0xf]
    %v1401 = vld [vmem:[%s1396 + $0x10] sm:$0xf]
    %v1402 = vld [vmem:[%s1396 + $0x14] sm:$0xf]
    %v1403 = vld [vmem:[%s1396 + $0x18] sm:$0xf]
    %v1404 = vld [vmem:[%s1396 + $0x1c] sm:$0xf]
    %v1405 = vld [vmem:[%s1396 + $0x20] sm:$0xf]
    %v1406 = vld [vmem:[%s1396 + $0x24] sm:$0xf]
    %v1407 = vld [vmem:[%s1396 + $0x28] sm:$0xf]
    %v1408 = vld [vmem:[%s1396 + $0x2c] sm:$0xf]
    %v1409 = vld [vmem:[%s1396 + $0x30] sm:$0xf]
    %v1410 = vld [vmem:[%s1396 + $0x34] sm:$0xf]
    %v1411 = vld [vmem:[%s1396 + $0x38] sm:$0xf]
    %v1412 = vld [vmem:[%s1396 + $0x3c] sm:$0xf]
    %v1416 = vunpack.c.l.b16 %v1377
    %v1417 = vunpack.c.l.b16 %v1378
    %v1418 = vunpack.c.l.b16 %v1395
    %v1419 = vpack.c.b16 %v1417, %v1416
    %v1420 = vpack.c.b16 %v1418, %v1418
    %v1422 = vshrl.u32 %v1419, 16
    %v1424 = vshll.u32 %v1419, 16
    %v1426 = vrot.slane %v1424, 1
    %v1427 = vor.u32 %v1422, %v1426
    %v1429 = vshll.u32 %v1420, 16
    %v1431 = vrot.slane %v1429, 1
    %v1432 = vsel %vm218, %v1427, %v1431
    %v1450 = vunpack.c.l.b16 %v1397
    %v1451 = vunpack.c.l.b16 %v1398
    %v1452 = vunpack.c.l.b16 %v1399
    %v1453 = vunpack.c.l.b16 %v1400
    %v1454 = vunpack.c.l.b16 %v1401
    %v1455 = vunpack.c.l.b16 %v1402
    %v1456 = vunpack.c.l.b16 %v1403
    %v1457 = vunpack.c.l.b16 %v1404
    %v1458 = vunpack.c.l.b16 %v1405
    %v1459 = vunpack.c.l.b16 %v1406
    %v1460 = vunpack.c.l.b16 %v1407
    %v1461 = vunpack.c.l.b16 %v1408
    %v1462 = vunpack.c.l.b16 %v1409
    %v1463 = vunpack.c.l.b16 %v1410
    %v1464 = vunpack.c.l.b16 %v1411
    %v1465 = vunpack.c.l.b16 %v1412
    %v1466 = vpack.c.b16 %v1451, %v1450
    %v1467 = vpack.c.b16 %v1453, %v1452
    %v1468 = vpack.c.b16 %v1455, %v1454
    %v1469 = vpack.c.b16 %v1457, %v1456
    %v1470 = vpack.c.b16 %v1459, %v1458
    %v1471 = vpack.c.b16 %v1461, %v1460
    %v1472 = vpack.c.b16 %v1463, %v1462
    %v1473 = vpack.c.b16 %v1465, %v1464
    %1482 = vmatprep.subr.bf16.mxu0 0
    %1483 = vmatpush1.bf16.msra.mxu0 %v1473
    %1484 = vmatprep.subr.bf16.mxu0 0
    %1485 = vmatpush1.bf16.msra.mxu0 %v1472
    %1486 = vmatprep.subr.bf16.mxu0 0
    %1487 = vmatpush1.bf16.msra.mxu0 %v1471
    %1488 = vmatprep.subr.bf16.mxu0 0
    %1489 = vmatpush1.bf16.msra.mxu0 %v1470
    %1490 = vmatprep.subr.bf16.mxu0 0
    %1491 = vmatpush1.bf16.msra.mxu0 %v1469
    %1492 = vmatprep.subr.bf16.mxu0 0
    %1493 = vmatpush1.bf16.msra.mxu0 %v1468
    %1494 = vmatprep.subr.bf16.mxu0 0
    %1495 = vmatpush1.bf16.msra.mxu0 %v1467
    %1496 = vmatprep.subr.bf16.mxu0 0
    %1497 = vmatpush1.bf16.msra.mxu0 %v1466
    %1498 = vmatprep.subr.bf16.mxu0 0
    %1499 = vmatpush2.bf16.msra.mxu0 0
    %1500 = vmatprep.subr.bf16.mxu0 0
    %1501 = vmatpush2.bf16.msra.mxu0 0
    %1502 = vmatprep.subr.bf16.mxu0 0
    %1503 = vmatpush2.bf16.msra.mxu0 0
    %1504 = vmatprep.subr.bf16.mxu0 0
    %1505 = vmatpush2.bf16.msra.mxu0 0
    %1506 = vmatprep.subr.bf16.mxu0 0
    %1507 = vmatpush2.bf16.msra.mxu0 0
    %1508 = vmatprep.subr.bf16.mxu0 0
    %1509 = vmatpush2.bf16.msra.mxu0 0
    %1510 = vmatprep.subr.bf16.mxu0 0
    %1511 = vmatpush2.bf16.msra.mxu0 0
    %1512 = vmatprep.subr.bf16.mxu0 0
    %1513 = vmatpush2.bf16.msra.mxu0 0
    %1514 = vmatprep.mubr.bf16.mxu0 0
    %1515 = vmatmul.mubr.bf16.gmra.mxu0 %v1432
    %v1516 = vpop.f32.mrf.mxu0
    %v1517 = vadd.f32 0.0, %v1516
    %v1518 = vpop.f32.mrf.mxu0
    %v1519 = vpop.f32.mrf.mxu0
    %v1520 = vadd.f32 0.0, %v1519
    %v1521 = vpop.f32.mrf.mxu0
    %1522 = vdwg.mxu0
    %v1540 = vunpack.c.l.b16 %v1379
    %v1541 = vunpack.c.l.b16 %v1380
    %v1542 = vunpack.c.l.b16 %v1381
    %v1543 = vunpack.c.l.b16 %v1382
    %v1544 = vunpack.c.l.b16 %v1383
    %v1545 = vunpack.c.l.b16 %v1384
    %v1546 = vunpack.c.l.b16 %v1385
    %v1547 = vunpack.c.l.b16 %v1386
    %v1548 = vunpack.c.l.b16 %v1387
    %v1549 = vunpack.c.l.b16 %v1388
    %v1550 = vunpack.c.l.b16 %v1389
    %v1551 = vunpack.c.l.b16 %v1390
    %v1552 = vunpack.c.l.b16 %v1391
    %v1553 = vunpack.c.l.b16 %v1392
    %v1554 = vunpack.c.l.b16 %v1393
    %v1555 = vunpack.c.l.b16 %v1394
    %v1556 = vpack.c.b16 %v1541, %v1540
    %v1557 = vpack.c.b16 %v1543, %v1542
    %v1558 = vpack.c.b16 %v1545, %v1544
    %v1559 = vpack.c.b16 %v1547, %v1546
    %v1560 = vpack.c.b16 %v1549, %v1548
    %v1561 = vpack.c.b16 %v1551, %v1550
    %v1562 = vpack.c.b16 %v1553, %v1552
    %v1563 = vpack.c.b16 %v1555, %v1554
    %1572 = vmatprep.subr.bf16.mxu0 0
    %1573 = vmatpush1.bf16.msra.mxu0 %v1563
    %1574 = vmatprep.subr.bf16.mxu0 0
    %1575 = vmatpush1.bf16.msra.mxu0 %v1562
    %1576 = vmatprep.subr.bf16.mxu0 0
    %1577 = vmatpush1.bf16.msra.mxu0 %v1561
    %1578 = vmatprep.subr.bf16.mxu0 0
    %1579 = vmatpush1.bf16.msra.mxu0 %v1560
    %1580 = vmatprep.subr.bf16.mxu0 0
    %1581 = vmatpush1.bf16.msra.mxu0 %v1559
    %1582 = vmatprep.subr.bf16.mxu0 0
    %1583 = vmatpush1.bf16.msra.mxu0 %v1558
    %1584 = vmatprep.subr.bf16.mxu0 0
    %1585 = vmatpush1.bf16.msra.mxu0 %v1557
    %1586 = vmatprep.subr.bf16.mxu0 0
    %1587 = vmatpush1.bf16.msra.mxu0 %v1556
    %1588 = vmatprep.subr.bf16.mxu0 0
    %1589 = vmatpush2.bf16.msra.mxu0 0
    %1590 = vmatprep.subr.bf16.mxu0 0
    %1591 = vmatpush2.bf16.msra.mxu0 0
    %1592 = vmatprep.subr.bf16.mxu0 0
    %1593 = vmatpush2.bf16.msra.mxu0 0
    %1594 = vmatprep.subr.bf16.mxu0 0
    %1595 = vmatpush2.bf16.msra.mxu0 0
    %1596 = vmatprep.subr.bf16.mxu0 0
    %1597 = vmatpush2.bf16.msra.mxu0 0
    %1598 = vmatprep.subr.bf16.mxu0 0
    %1599 = vmatpush2.bf16.msra.mxu0 0
    %1600 = vmatprep.subr.bf16.mxu0 0
    %1601 = vmatpush2.bf16.msra.mxu0 0
    %1602 = vmatprep.subr.bf16.mxu0 0
    %1603 = vmatpush2.bf16.msra.mxu0 0
    %1604 = vmatprep.mubr.bf16.mxu0 0
    %1605 = vmatmul.mubr.bf16.gmra.mxu0 %v1419
    %v1606 = vpop.f32.mrf.mxu0
    %v1607 = vadd.f32 %v1517, %v1606
    %v1608 = vpop.f32.mrf.mxu0
    %v1609 = vpop.f32.mrf.mxu0
    %v1610 = vadd.f32 %v1520, %v1609
    %v1611 = vpop.f32.mrf.mxu0
    %1612 = vdwg.mxu0
    %v1613 = vld [vmem:[#allocation2] sm:$0xe]
    %s1614 = scalar_lea.vmem [#allocation8], 128
    %v1615 = vld [vmem:[%s1614] sm:$0xf]
    %v1616 = vld [vmem:[%s1614 + $0x4] sm:$0xf]
    %v1617 = vld [vmem:[%s1614 + $0x8] sm:$0xf]
    %v1618 = vld [vmem:[%s1614 + $0xc] sm:$0xf]
    %v1619 = vld [vmem:[%s1614 + $0x10] sm:$0xf]
    %v1620 = vld [vmem:[%s1614 + $0x14] sm:$0xf]
    %v1621 = vld [vmem:[%s1614 + $0x18] sm:$0xf]
    %v1622 = vld [vmem:[%s1614 + $0x1c] sm:$0xf]
    %v1623 = vld [vmem:[%s1614 + $0x20] sm:$0xf]
    %v1624 = vld [vmem:[%s1614 + $0x24] sm:$0xf]
    %v1625 = vld [vmem:[%s1614 + $0x28] sm:$0xf]
    %v1626 = vld [vmem:[%s1614 + $0x2c] sm:$0xf]
    %v1627 = vld [vmem:[%s1614 + $0x30] sm:$0xf]
    %v1628 = vld [vmem:[%s1614 + $0x34] sm:$0xf]
    %v1629 = vld [vmem:[%s1614 + $0x38] sm:$0xf]
    %v1630 = vld [vmem:[%s1614 + $0x3c] sm:$0xf]
    %v1632 = vunpack.c.l.b16 %v1613
    %v1633 = vpack.c.b16 %v1417, %v1632
    %v1634 = vrot.slane %v1633, 1
    %v1635 = vrot.slane %v1420, 1
    %v1636 = vsel %vm432, %v1634, %v1635
    %v1654 = vunpack.c.l.b16 %v1615
    %v1655 = vunpack.c.l.b16 %v1616
    %v1656 = vunpack.c.l.b16 %v1617
    %v1657 = vunpack.c.l.b16 %v1618
    %v1658 = vunpack.c.l.b16 %v1619
    %v1659 = vunpack.c.l.b16 %v1620
    %v1660 = vunpack.c.l.b16 %v1621
    %v1661 = vunpack.c.l.b16 %v1622
    %v1662 = vunpack.c.l.b16 %v1623
    %v1663 = vunpack.c.l.b16 %v1624
    %v1664 = vunpack.c.l.b16 %v1625
    %v1665 = vunpack.c.l.b16 %v1626
    %v1666 = vunpack.c.l.b16 %v1627
    %v1667 = vunpack.c.l.b16 %v1628
    %v1668 = vunpack.c.l.b16 %v1629
    %v1669 = vunpack.c.l.b16 %v1630
    %v1670 = vpack.c.b16 %v1655, %v1654
    %v1671 = vpack.c.b16 %v1657, %v1656
    %v1672 = vpack.c.b16 %v1659, %v1658
    %v1673 = vpack.c.b16 %v1661, %v1660
    %v1674 = vpack.c.b16 %v1663, %v1662
    %v1675 = vpack.c.b16 %v1665, %v1664
    %v1676 = vpack.c.b16 %v1667, %v1666
    %v1677 = vpack.c.b16 %v1669, %v1668
    %1686 = vmatprep.subr.bf16.mxu0 0
    %1687 = vmatpush1.bf16.msra.mxu0 %v1677
    %1688 = vmatprep.subr.bf16.mxu0 0
    %1689 = vmatpush1.bf16.msra.mxu0 %v1676
    %1690 = vmatprep.subr.bf16.mxu0 0
    %1691 = vmatpush1.bf16.msra.mxu0 %v1675
    %1692 = vmatprep.subr.bf16.mxu0 0
    %1693 = vmatpush1.bf16.msra.mxu0 %v1674
    %1694 = vmatprep.subr.bf16.mxu0 0
    %1695 = vmatpush1.bf16.msra.mxu0 %v1673
    %1696 = vmatprep.subr.bf16.mxu0 0
    %1697 = vmatpush1.bf16.msra.mxu0 %v1672
    %1698 = vmatprep.subr.bf16.mxu0 0
    %1699 = vmatpush1.bf16.msra.mxu0 %v1671
    %1700 = vmatprep.subr.bf16.mxu0 0
    %1701 = vmatpush1.bf16.msra.mxu0 %v1670
    %1702 = vmatprep.subr.bf16.mxu0 0
    %1703 = vmatpush2.bf16.msra.mxu0 0
    %1704 = vmatprep.subr.bf16.mxu0 0
    %1705 = vmatpush2.bf16.msra.mxu0 0
    %1706 = vmatprep.subr.bf16.mxu0 0
    %1707 = vmatpush2.bf16.msra.mxu0 0
    %1708 = vmatprep.subr.bf16.mxu0 0
    %1709 = vmatpush2.bf16.msra.mxu0 0
    %1710 = vmatprep.subr.bf16.mxu0 0
    %1711 = vmatpush2.bf16.msra.mxu0 0
    %1712 = vmatprep.subr.bf16.mxu0 0
    %1713 = vmatpush2.bf16.msra.mxu0 0
    %1714 = vmatprep.subr.bf16.mxu0 0
    %1715 = vmatpush2.bf16.msra.mxu0 0
    %1716 = vmatprep.subr.bf16.mxu0 0
    %1717 = vmatpush2.bf16.msra.mxu0 0
    %1718 = vmatprep.mubr.bf16.mxu0 0
    %1719 = vmatmul.mubr.bf16.gmra.mxu0 %v1636
    %v1720 = vpop.f32.mrf.mxu0
    %v1721 = vadd.f32 0.0, %v1720
    %v1722 = vpop.f32.mrf.mxu0
    %v1723 = vpop.f32.mrf.mxu0
    %v1724 = vadd.f32 0.0, %v1723
    %v1725 = vpop.f32.mrf.mxu0
    %1726 = vdwg.mxu0
    %v1727 = vadd.f32 %v1607, %v1721
    %v1728 = vadd.f32 %v1610, %v1724
    %v1729 = vld [vmem:[%s8] sm:$0x1]
    %v1730 = vld [vmem:[%s9] sm:$0x1]
    %v1731 = vadd.f32 %v1727, %v1728
    %v1732 = vrot.slane %v1731, 4
    %v1733 = vadd.f32 %v1731, %v1732
    %v1734 = vrot.slane %v1733, 2
    %v1735 = vadd.f32 %v1733, %v1734
    %v1736 = vrot.slane %v1735, 1
    %v1737 = vadd.f32 %v1735, %v1736
    %v1738 = vmul.f32 %v1727, %v1727
    %v1739 = vmul.f32 %v1728, %v1728
    %v1740 = vadd.f32 %v1738, %v1739
    %v1741 = vrot.slane %v1740, 4
    %v1742 = vadd.f32 %v1740, %v1741
    %v1743 = vrot.slane %v1742, 2
    %v1744 = vadd.f32 %v1742, %v1743
    %v1745 = vrot.slane %v1744, 1
    %v1746 = vadd.f32 %v1744, %v1745
    %v1747 = vsel %vm546, %v1737, %v1746
    %1748 = vmatprep.subr.mxu0 0.0
    %1749 = vmatpush1.msra.mxu0 %v122
    %1750 = vmatprep.subr.mxu0 0.0
    %1751 = vmatpush1.msra.mxu0 %v121
    %1752 = vmatprep.subr.mxu0 0.0
    %1753 = vmatpush1.msra.mxu0 %v120
    %1754 = vmatprep.subr.mxu0 0.0
    %1755 = vmatpush1.msra.mxu0 %v119
    %1756 = vmatprep.subr.mxu0 0.0
    %1757 = vmatpush1.msra.mxu0 %v118
    %1758 = vmatprep.subr.mxu0 0.0
    %1759 = vmatpush1.msra.mxu0 %v117
    %1760 = vmatprep.subr.mxu0 0.0
    %1761 = vmatpush1.msra.mxu0 %v116
    %1762 = vmatprep.subr.mxu0 0.0
    %1763 = vmatpush1.msra.mxu0 %v115
    %1764 = vmatprep.subr.mxu0 0.0
    %1765 = vmatpush1.msra.mxu0 %v114
    %1766 = vmatprep.subr.mxu0 0.0
    %1767 = vmatpush1.msra.mxu0 %v113
    %1768 = vmatprep.subr.mxu0 0.0
    %1769 = vmatpush1.msra.mxu0 %v112
    %1770 = vmatprep.subr.mxu0 0.0
    %1771 = vmatpush1.msra.mxu0 %v111
    %1772 = vmatprep.subr.mxu0 0.0
    %1773 = vmatpush1.msra.mxu0 %v110
    %1774 = vmatprep.subr.mxu0 0.0
    %1775 = vmatpush1.msra.mxu0 %v109
    %1776 = vmatprep.subr.mxu0 0.0
    %1777 = vmatpush1.msra.mxu0 %v108
    %1778 = vmatprep.subr.mxu0 0.0
    %1779 = vmatpush1.msra.mxu0 %v107
    %1780 = vmatprep.subr.mxu0 0.0
    %1781 = vmatpush2.msra.mxu0 0.0
    %1782 = vmatprep.subr.mxu0 0.0
    %1783 = vmatpush2.msra.mxu0 0.0
    %1784 = vmatprep.subr.mxu0 0.0
    %1785 = vmatpush2.msra.mxu0 0.0
    %1786 = vmatprep.subr.mxu0 0.0
    %1787 = vmatpush2.msra.mxu0 0.0
    %1788 = vmatprep.subr.mxu0 0.0
    %1789 = vmatpush2.msra.mxu0 0.0
    %1790 = vmatprep.subr.mxu0 0.0
    %1791 = vmatpush2.msra.mxu0 0.0
    %1792 = vmatprep.subr.mxu0 0.0
    %1793 = vmatpush2.msra.mxu0 0.0
    %1794 = vmatprep.subr.mxu0 0.0
    %1795 = vmatpush2.msra.mxu0 0.0
    %1796 = vmatprep.subr.mxu0 0.0
    %1797 = vmatpush2.msra.mxu0 0.0
    %1798 = vmatprep.subr.mxu0 0.0
    %1799 = vmatpush2.msra.mxu0 0.0
    %1800 = vmatprep.subr.mxu0 0.0
    %1801 = vmatpush2.msra.mxu0 0.0
    %1802 = vmatprep.subr.mxu0 0.0
    %1803 = vmatpush2.msra.mxu0 0.0
    %1804 = vmatprep.subr.mxu0 0.0
    %1805 = vmatpush2.msra.mxu0 0.0
    %1806 = vmatprep.subr.mxu0 0.0
    %1807 = vmatpush2.msra.mxu0 0.0
    %1808 = vmatprep.subr.mxu0 0.0
    %1809 = vmatpush2.msra.mxu0 0.0
    %1810 = vmatprep.subr.mxu0 0.0
    %1811 = vmatpush2.msra.mxu0 0.0
    %1812 = vmatprep.mubr.f32.mxu0 0.0
    %1813 = vmatmul.mubr.f32.gmra.mxu0 %v1747
    %v1814 = vpop.f32.mrf.mxu0
    %v1815 = vadd.f32 0.0, %v1814
    %v1816 = vpop.f32.mrf.mxu0
    %1817 = vdwg.mxu0
    %v1818 = vmul.f32 %v1815, %v618
    %v1819 = vmul.f32 %v1818, %v1818
    %v1821 = vrot.slane %v1819, 7
    %v1823 = vsub.f32 %v1818, %v1821
    %v1824 = vadd.f32 %v1823, 1e-05
    %v1825 = vrsqrt.pop %v1824
    %v1828 = vunpack.c.l.s4 1966171168
    %v1829 = vunpack.c.0.s8 %v1828
    %v1830 = vlaneseq
    %v1831 = vshrl.u32 %v1830, 7
    %v1832 = vsub.s32 %v1829, %v1831
    %v1833 = vrot.slane %v1825, %v1832
    %v1834 = vcombine.high %v1833, %v1833
    %v1836 = vunpack.c.l.s4 1966171168
    %v1837 = vunpack.c.0.s8 %v1836
    %v1838 = vlaneseq
    %v1839 = vshrl.u32 %v1838, 7
    %v1840 = vsub.s32 %v1837, %v1839
    %v1841 = vrot.slane %v1834, %v1840
    %v1843 = vmul.f32 %v1729, %v1841
    %v1844 = vmul.f32 %v1818, %v1843
    %v1845 = vsub.f32 %v1730, %v1844
    %v1847 = vlaneseq
    %v1848 = vshrl.u32 %v1847, 7
    %v1849 = vsub.s32 0, %v1848
    %v1850 = vrot.slane %v1845, %v1849
    %v1852 = vsel %vm546, %v1843, %v1850
    %v1854 = vsel %vm654, %v1852, 0
    %1856 = vmatprep.subr.mxu0 0.0
    %1857 = vmatpush1.msra.mxu0 0.0
    %1858 = vmatprep.subr.mxu0 0.0
    %1859 = vmatpush1.msra.mxu0 0.0
    %1860 = vmatprep.subr.mxu0 0.0
    %1861 = vmatpush1.msra.mxu0 0.0
    %1862 = vmatprep.subr.mxu0 0.0
    %1863 = vmatpush1.msra.mxu0 0.0
    %1864 = vmatprep.subr.mxu0 0.0
    %1865 = vmatpush1.msra.mxu0 0.0
    %1866 = vmatprep.subr.mxu0 0.0
    %1867 = vmatpush1.msra.mxu0 0.0
    %1868 = vmatprep.subr.mxu0 0.0
    %1869 = vmatpush1.msra.mxu0 0.0
    %1870 = vmatprep.subr.mxu0 0.0
    %1871 = vmatpush1.msra.mxu0 0.0
    %1872 = vmatprep.subr.mxu0 0.0
    %1873 = vmatpush1.msra.mxu0 0.0
    %1874 = vmatprep.subr.mxu0 0.0
    %1875 = vmatpush1.msra.mxu0 0.0
    %1876 = vmatprep.subr.mxu0 0.0
    %1877 = vmatpush1.msra.mxu0 0.0
    %1878 = vmatprep.subr.mxu0 0.0
    %1879 = vmatpush1.msra.mxu0 0.0
    %1880 = vmatprep.subr.mxu0 0.0
    %1881 = vmatpush1.msra.mxu0 0.0
    %1882 = vmatprep.subr.mxu0 0.0
    %1883 = vmatpush1.msra.mxu0 0.0
    %1884 = vmatprep.subr.mxu0 0.0
    %1885 = vmatpush1.msra.mxu0 0.0
    %1886 = vmatprep.subr.mxu0 0.0
    %1887 = vmatpush1.msra.mxu0 %v660
    %1888 = vmatprep.subr.mxu0 0.0
    %1889 = vmatpush2.msra.mxu0 0.0
    %1890 = vmatprep.subr.mxu0 0.0
    %1891 = vmatpush2.msra.mxu0 0.0
    %1892 = vmatprep.subr.mxu0 0.0
    %1893 = vmatpush2.msra.mxu0 0.0
    %1894 = vmatprep.subr.mxu0 0.0
    %1895 = vmatpush2.msra.mxu0 0.0
    %1896 = vmatprep.subr.mxu0 0.0
    %1897 = vmatpush2.msra.mxu0 0.0
    %1898 = vmatprep.subr.mxu0 0.0
    %1899 = vmatpush2.msra.mxu0 0.0
    %1900 = vmatprep.subr.mxu0 0.0
    %1901 = vmatpush2.msra.mxu0 0.0
    %1902 = vmatprep.subr.mxu0 0.0
    %1903 = vmatpush2.msra.mxu0 0.0
    %1904 = vmatprep.subr.mxu0 0.0
    %1905 = vmatpush2.msra.mxu0 0.0
    %1906 = vmatprep.subr.mxu0 0.0
    %1907 = vmatpush2.msra.mxu0 0.0
    %1908 = vmatprep.subr.mxu0 0.0
    %1909 = vmatpush2.msra.mxu0 0.0
    %1910 = vmatprep.subr.mxu0 0.0
    %1911 = vmatpush2.msra.mxu0 0.0
    %1912 = vmatprep.subr.mxu0 0.0
    %1913 = vmatpush2.msra.mxu0 0.0
    %1914 = vmatprep.subr.mxu0 0.0
    %1915 = vmatpush2.msra.mxu0 0.0
    %1916 = vmatprep.subr.mxu0 0.0
    %1917 = vmatpush2.msra.mxu0 0.0
    %1918 = vmatprep.subr.mxu0 0.0
    %1919 = vmatpush2.msra.mxu0 0.0
    %1920 = vmatprep.mubr.f32.mxu0 0.0
    %1921 = vmatmul.mubr.f32.gmra.mxu0 %v1854
    %v1922 = vpop.f32.mrf.mxu0
    %v1923 = vadd.f32 0.0, %v1922
    %v1924 = vpop.f32.mrf.mxu0
    %1925 = vdwg.mxu0
    %v1926 = vlaneseq
    %v1927 = vshrl.u32 %v1926, 7
    %v1928 = vsub.s32 0, %v1927
    %v1929 = vrot.slane %v1923, %v1928
    %v1930 = vmul.f32 %v1727, %v1929
    %v1931 = vmul.f32 %v1728, %v1929
    %v1932 = vlaneseq
    %v1933 = vshrl.u32 %v1932, 7
    %v1934 = vsub.s32 1, %v1933
    %v1935 = vrot.slane %v1923, %v1934
    %v1936 = vadd.f32 %v1930, %v1935
    %v1937 = vadd.f32 %v1931, %v1935
    %v1938 = vmax.f32 %v1936, 0.0
    %v1939 = vmax.f32 %v1937, 0.0
    %v1940 = vpack.c.bf16 %v1939, %v1938
    %v1942 = vunpack.c.l.b16 %v1940
    %v1943 = vunpack.c.h.b16 %v1940
    %v1944 = vpack.c.b16 %v1942, %v1942
    %v1945 = vpack.c.b16 %v1943, %v1943
    %v1947 = vshrl.u32 %v1944, 16
    %v1949 = vrot.slane %v1947, 7
    %v1950 = vshll.u32 %v1944, 16
    %v1952 = vor.u32 %v1949, %v1950
    %v1953 = vrot.slane %v1949, 4
    %v1955 = vshrl.u32 %v1945, 16
    %v1957 = vrot.slane %v1955, 7
    %v1958 = vshll.u32 %v1945, 16
    %v1960 = vor.u32 %v1957, %v1958
    %v1961 = vsel %vm144, %v1953, %v1960
    %v1962 = vrot.slane %v1957, 4
    %v1966 = vld [vmem:[#allocation2] sm:$0xf]
    %v1967 = vsel %vm166, %v1952, %v1966
    %1968 = vst [vmem:[#allocation2] sm:$0xf] %v1967
    %1969 = vst [vmem:[#allocation2 + $0x4] sm:$0xf] %v1961
    %v1970 = vld [vmem:[#allocation2 + $0x8] sm:$0x1]
    %v1971 = vsel %vm126, %v1962, %v1970
    %1972 = vst [vmem:[#allocation2 + $0x8] sm:$0x1] %v1971
    %v1973 = vld [vmem:[#allocation2] sm:$0xf]
    %v1974 = vld [vmem:[#allocation2 + $0x4] sm:$0xf]
    %v1975 = vld [vmem:[#allocation9] sm:$0xf]
    %v1976 = vld [vmem:[#allocation9 + $0x4] sm:$0xf]
    %v1977 = vld [vmem:[#allocation9 + $0x8] sm:$0xf]
    %v1978 = vld [vmem:[#allocation9 + $0xc] sm:$0xf]
    %v1979 = vld [vmem:[#allocation9 + $0x10] sm:$0xf]
    %v1980 = vld [vmem:[#allocation9 + $0x14] sm:$0xf]
    %v1981 = vld [vmem:[#allocation9 + $0x18] sm:$0xf]
    %v1982 = vld [vmem:[#allocation9 + $0x1c] sm:$0xf]
    %v1983 = vld [vmem:[#allocation9 + $0x20] sm:$0xf]
    %v1984 = vld [vmem:[#allocation9 + $0x24] sm:$0xf]
    %v1985 = vld [vmem:[#allocation9 + $0x28] sm:$0xf]
    %v1986 = vld [vmem:[#allocation9 + $0x2c] sm:$0xf]
    %v1987 = vld [vmem:[#allocation9 + $0x30] sm:$0xf]
    %v1988 = vld [vmem:[#allocation9 + $0x34] sm:$0xf]
    %v1989 = vld [vmem:[#allocation9 + $0x38] sm:$0xf]
    %v1990 = vld [vmem:[#allocation9 + $0x3c] sm:$0xf]
    %v1991 = vld [vmem:[#allocation2 + $0x8] sm:$0x1]
    %s1992 = scalar_lea.vmem [#allocation9], 64
    %v1993 = vld [vmem:[%s1992] sm:$0xf]
    %v1994 = vld [vmem:[%s1992 + $0x4] sm:$0xf]
    %v1995 = vld [vmem:[%s1992 + $0x8] sm:$0xf]
    %v1996 = vld [vmem:[%s1992 + $0xc] sm:$0xf]
    %v1997 = vld [vmem:[%s1992 + $0x10] sm:$0xf]
    %v1998 = vld [vmem:[%s1992 + $0x14] sm:$0xf]
    %v1999 = vld [vmem:[%s1992 + $0x18] sm:$0xf]
    %v2000 = vld [vmem:[%s1992 + $0x1c] sm:$0xf]
    %v2001 = vld [vmem:[%s1992 + $0x20] sm:$0xf]
    %v2002 = vld [vmem:[%s1992 + $0x24] sm:$0xf]
    %v2003 = vld [vmem:[%s1992 + $0x28] sm:$0xf]
    %v2004 = vld [vmem:[%s1992 + $0x2c] sm:$0xf]
    %v2005 = vld [vmem:[%s1992 + $0x30] sm:$0xf]
    %v2006 = vld [vmem:[%s1992 + $0x34] sm:$0xf]
    %v2007 = vld [vmem:[%s1992 + $0x38] sm:$0xf]
    %v2008 = vld [vmem:[%s1992 + $0x3c] sm:$0xf]
    %v2012 = vunpack.c.l.b16 %v1973
    %v2013 = vunpack.c.l.b16 %v1974
    %v2014 = vunpack.c.l.b16 %v1991
    %v2015 = vpack.c.b16 %v2013, %v2012
    %v2016 = vpack.c.b16 %v2014, %v2014
    %v2018 = vshrl.u32 %v2015, 16
    %v2020 = vshll.u32 %v2015, 16
    %v2022 = vrot.slane %v2020, 1
    %v2023 = vor.u32 %v2018, %v2022
    %v2025 = vshll.u32 %v2016, 16
    %v2027 = vrot.slane %v2025, 1
    %v2028 = vsel %vm218, %v2023, %v2027
    %v2046 = vunpack.c.l.b16 %v1993
    %v2047 = vunpack.c.l.b16 %v1994
    %v2048 = vunpack.c.l.b16 %v1995
    %v2049 = vunpack.c.l.b16 %v1996
    %v2050 = vunpack.c.l.b16 %v1997
    %v2051 = vunpack.c.l.b16 %v1998
    %v2052 = vunpack.c.l.b16 %v1999
    %v2053 = vunpack.c.l.b16 %v2000
    %v2054 = vunpack.c.l.b16 %v2001
    %v2055 = vunpack.c.l.b16 %v2002
    %v2056 = vunpack.c.l.b16 %v2003
    %v2057 = vunpack.c.l.b16 %v2004
    %v2058 = vunpack.c.l.b16 %v2005
    %v2059 = vunpack.c.l.b16 %v2006
    %v2060 = vunpack.c.l.b16 %v2007
    %v2061 = vunpack.c.l.b16 %v2008
    %v2062 = vpack.c.b16 %v2047, %v2046
    %v2063 = vpack.c.b16 %v2049, %v2048
    %v2064 = vpack.c.b16 %v2051, %v2050
    %v2065 = vpack.c.b16 %v2053, %v2052
    %v2066 = vpack.c.b16 %v2055, %v2054
    %v2067 = vpack.c.b16 %v2057, %v2056
    %v2068 = vpack.c.b16 %v2059, %v2058
    %v2069 = vpack.c.b16 %v2061, %v2060
    %2078 = vmatprep.subr.bf16.mxu0 0
    %2079 = vmatpush1.bf16.msra.mxu0 %v2069
    %2080 = vmatprep.subr.bf16.mxu0 0
    %2081 = vmatpush1.bf16.msra.mxu0 %v2068
    %2082 = vmatprep.subr.bf16.mxu0 0
    %2083 = vmatpush1.bf16.msra.mxu0 %v2067
    %2084 = vmatprep.subr.bf16.mxu0 0
    %2085 = vmatpush1.bf16.msra.mxu0 %v2066
    %2086 = vmatprep.subr.bf16.mxu0 0
    %2087 = vmatpush1.bf16.msra.mxu0 %v2065
    %2088 = vmatprep.subr.bf16.mxu0 0
    %2089 = vmatpush1.bf16.msra.mxu0 %v2064
    %2090 = vmatprep.subr.bf16.mxu0 0
    %2091 = vmatpush1.bf16.msra.mxu0 %v2063
    %2092 = vmatprep.subr.bf16.mxu0 0
    %2093 = vmatpush1.bf16.msra.mxu0 %v2062
    %2094 = vmatprep.subr.bf16.mxu0 0
    %2095 = vmatpush2.bf16.msra.mxu0 0
    %2096 = vmatprep.subr.bf16.mxu0 0
    %2097 = vmatpush2.bf16.msra.mxu0 0
    %2098 = vmatprep.subr.bf16.mxu0 0
    %2099 = vmatpush2.bf16.msra.mxu0 0
    %2100 = vmatprep.subr.bf16.mxu0 0
    %2101 = vmatpush2.bf16.msra.mxu0 0
    %2102 = vmatprep.subr.bf16.mxu0 0
    %2103 = vmatpush2.bf16.msra.mxu0 0
    %2104 = vmatprep.subr.bf16.mxu0 0
    %2105 = vmatpush2.bf16.msra.mxu0 0
    %2106 = vmatprep.subr.bf16.mxu0 0
    %2107 = vmatpush2.bf16.msra.mxu0 0
    %2108 = vmatprep.subr.bf16.mxu0 0
    %2109 = vmatpush2.bf16.msra.mxu0 0
    %2110 = vmatprep.mubr.bf16.mxu0 0
    %2111 = vmatmul.mubr.bf16.gmra.mxu0 %v2028
    %v2112 = vpop.f32.mrf.mxu0
    %v2113 = vadd.f32 0.0, %v2112
    %v2114 = vpop.f32.mrf.mxu0
    %v2115 = vpop.f32.mrf.mxu0
    %v2116 = vadd.f32 0.0, %v2115
    %v2117 = vpop.f32.mrf.mxu0
    %2118 = vdwg.mxu0
    %v2136 = vunpack.c.l.b16 %v1975
    %v2137 = vunpack.c.l.b16 %v1976
    %v2138 = vunpack.c.l.b16 %v1977
    %v2139 = vunpack.c.l.b16 %v1978
    %v2140 = vunpack.c.l.b16 %v1979
    %v2141 = vunpack.c.l.b16 %v1980
    %v2142 = vunpack.c.l.b16 %v1981
    %v2143 = vunpack.c.l.b16 %v1982
    %v2144 = vunpack.c.l.b16 %v1983
    %v2145 = vunpack.c.l.b16 %v1984
    %v2146 = vunpack.c.l.b16 %v1985
    %v2147 = vunpack.c.l.b16 %v1986
    %v2148 = vunpack.c.l.b16 %v1987
    %v2149 = vunpack.c.l.b16 %v1988
    %v2150 = vunpack.c.l.b16 %v1989
    %v2151 = vunpack.c.l.b16 %v1990
    %v2152 = vpack.c.b16 %v2137, %v2136
    %v2153 = vpack.c.b16 %v2139, %v2138
    %v2154 = vpack.c.b16 %v2141, %v2140
    %v2155 = vpack.c.b16 %v2143, %v2142
    %v2156 = vpack.c.b16 %v2145, %v2144
    %v2157 = vpack.c.b16 %v2147, %v2146
    %v2158 = vpack.c.b16 %v2149, %v2148
    %v2159 = vpack.c.b16 %v2151, %v2150
    %2168 = vmatprep.subr.bf16.mxu0 0
    %2169 = vmatpush1.bf16.msra.mxu0 %v2159
    %2170 = vmatprep.subr.bf16.mxu0 0
    %2171 = vmatpush1.bf16.msra.mxu0 %v2158
    %2172 = vmatprep.subr.bf16.mxu0 0
    %2173 = vmatpush1.bf16.msra.mxu0 %v2157
    %2174 = vmatprep.subr.bf16.mxu0 0
    %2175 = vmatpush1.bf16.msra.mxu0 %v2156
    %2176 = vmatprep.subr.bf16.mxu0 0
    %2177 = vmatpush1.bf16.msra.mxu0 %v2155
    %2178 = vmatprep.subr.bf16.mxu0 0
    %2179 = vmatpush1.bf16.msra.mxu0 %v2154
    %2180 = vmatprep.subr.bf16.mxu0 0
    %2181 = vmatpush1.bf16.msra.mxu0 %v2153
    %2182 = vmatprep.subr.bf16.mxu0 0
    %2183 = vmatpush1.bf16.msra.mxu0 %v2152
    %2184 = vmatprep.subr.bf16.mxu0 0
    %2185 = vmatpush2.bf16.msra.mxu0 0
    %2186 = vmatprep.subr.bf16.mxu0 0
    %2187 = vmatpush2.bf16.msra.mxu0 0
    %2188 = vmatprep.subr.bf16.mxu0 0
    %2189 = vmatpush2.bf16.msra.mxu0 0
    %2190 = vmatprep.subr.bf16.mxu0 0
    %2191 = vmatpush2.bf16.msra.mxu0 0
    %2192 = vmatprep.subr.bf16.mxu0 0
    %2193 = vmatpush2.bf16.msra.mxu0 0
    %2194 = vmatprep.subr.bf16.mxu0 0
    %2195 = vmatpush2.bf16.msra.mxu0 0
    %2196 = vmatprep.subr.bf16.mxu0 0
    %2197 = vmatpush2.bf16.msra.mxu0 0
    %2198 = vmatprep.subr.bf16.mxu0 0
    %2199 = vmatpush2.bf16.msra.mxu0 0
    %2200 = vmatprep.mubr.bf16.mxu0 0
    %2201 = vmatmul.mubr.bf16.gmra.mxu0 %v2015
    %v2202 = vpop.f32.mrf.mxu0
    %v2203 = vadd.f32 %v2113, %v2202
    %v2204 = vpop.f32.mrf.mxu0
    %v2205 = vpop.f32.mrf.mxu0
    %v2206 = vadd.f32 %v2116, %v2205
    %v2207 = vpop.f32.mrf.mxu0
    %2208 = vdwg.mxu0
    %v2209 = vld [vmem:[#allocation2] sm:$0xe]
    %s2210 = scalar_lea.vmem [#allocation9], 128
    %v2211 = vld [vmem:[%s2210] sm:$0xf]
    %v2212 = vld [vmem:[%s2210 + $0x4] sm:$0xf]
    %v2213 = vld [vmem:[%s2210 + $0x8] sm:$0xf]
    %v2214 = vld [vmem:[%s2210 + $0xc] sm:$0xf]
    %v2215 = vld [vmem:[%s2210 + $0x10] sm:$0xf]
    %v2216 = vld [vmem:[%s2210 + $0x14] sm:$0xf]
    %v2217 = vld [vmem:[%s2210 + $0x18] sm:$0xf]
    %v2218 = vld [vmem:[%s2210 + $0x1c] sm:$0xf]
    %v2219 = vld [vmem:[%s2210 + $0x20] sm:$0xf]
    %v2220 = vld [vmem:[%s2210 + $0x24] sm:$0xf]
    %v2221 = vld [vmem:[%s2210 + $0x28] sm:$0xf]
    %v2222 = vld [vmem:[%s2210 + $0x2c] sm:$0xf]
    %v2223 = vld [vmem:[%s2210 + $0x30] sm:$0xf]
    %v2224 = vld [vmem:[%s2210 + $0x34] sm:$0xf]
    %v2225 = vld [vmem:[%s2210 + $0x38] sm:$0xf]
    %v2226 = vld [vmem:[%s2210 + $0x3c] sm:$0xf]
    %v2228 = vunpack.c.l.b16 %v2209
    %v2229 = vpack.c.b16 %v2013, %v2228
    %v2230 = vrot.slane %v2229, 1
    %v2231 = vrot.slane %v2016, 1
    %v2232 = vsel %vm432, %v2230, %v2231
    %v2250 = vunpack.c.l.b16 %v2211
    %v2251 = vunpack.c.l.b16 %v2212
    %v2252 = vunpack.c.l.b16 %v2213
    %v2253 = vunpack.c.l.b16 %v2214
    %v2254 = vunpack.c.l.b16 %v2215
    %v2255 = vunpack.c.l.b16 %v2216
    %v2256 = vunpack.c.l.b16 %v2217
    %v2257 = vunpack.c.l.b16 %v2218
    %v2258 = vunpack.c.l.b16 %v2219
    %v2259 = vunpack.c.l.b16 %v2220
    %v2260 = vunpack.c.l.b16 %v2221
    %v2261 = vunpack.c.l.b16 %v2222
    %v2262 = vunpack.c.l.b16 %v2223
    %v2263 = vunpack.c.l.b16 %v2224
    %v2264 = vunpack.c.l.b16 %v2225
    %v2265 = vunpack.c.l.b16 %v2226
    %v2266 = vpack.c.b16 %v2251, %v2250
    %v2267 = vpack.c.b16 %v2253, %v2252
    %v2268 = vpack.c.b16 %v2255, %v2254
    %v2269 = vpack.c.b16 %v2257, %v2256
    %v2270 = vpack.c.b16 %v2259, %v2258
    %v2271 = vpack.c.b16 %v2261, %v2260
    %v2272 = vpack.c.b16 %v2263, %v2262
    %v2273 = vpack.c.b16 %v2265, %v2264
    %2282 = vmatprep.subr.bf16.mxu0 0
    %2283 = vmatpush1.bf16.msra.mxu0 %v2273
    %2284 = vmatprep.subr.bf16.mxu0 0
    %2285 = vmatpush1.bf16.msra.mxu0 %v2272
    %2286 = vmatprep.subr.bf16.mxu0 0
    %2287 = vmatpush1.bf16.msra.mxu0 %v2271
    %2288 = vmatprep.subr.bf16.mxu0 0
    %2289 = vmatpush1.bf16.msra.mxu0 %v2270
    %2290 = vmatprep.subr.bf16.mxu0 0
    %2291 = vmatpush1.bf16.msra.mxu0 %v2269
    %2292 = vmatprep.subr.bf16.mxu0 0
    %2293 = vmatpush1.bf16.msra.mxu0 %v2268
    %2294 = vmatprep.subr.bf16.mxu0 0
    %2295 = vmatpush1.bf16.msra.mxu0 %v2267
    %2296 = vmatprep.subr.bf16.mxu0 0
    %2297 = vmatpush1.bf16.msra.mxu0 %v2266
    %2298 = vmatprep.subr.bf16.mxu0 0
    %2299 = vmatpush2.bf16.msra.mxu0 0
    %2300 = vmatprep.subr.bf16.mxu0 0
    %2301 = vmatpush2.bf16.msra.mxu0 0
    %2302 = vmatprep.subr.bf16.mxu0 0
    %2303 = vmatpush2.bf16.msra.mxu0 0
    %2304 = vmatprep.subr.bf16.mxu0 0
    %2305 = vmatpush2.bf16.msra.mxu0 0
    %2306 = vmatprep.subr.bf16.mxu0 0
    %2307 = vmatpush2.bf16.msra.mxu0 0
    %2308 = vmatprep.subr.bf16.mxu0 0
    %2309 = vmatpush2.bf16.msra.mxu0 0
    %2310 = vmatprep.subr.bf16.mxu0 0
    %2311 = vmatpush2.bf16.msra.mxu0 0
    %2312 = vmatprep.subr.bf16.mxu0 0
    %2313 = vmatpush2.bf16.msra.mxu0 0
    %2314 = vmatprep.mubr.bf16.mxu0 0
    %2315 = vmatmul.mubr.bf16.gmra.mxu0 %v2232
    %v2316 = vpop.f32.mrf.mxu0
    %v2317 = vadd.f32 0.0, %v2316
    %v2318 = vpop.f32.mrf.mxu0
    %v2319 = vpop.f32.mrf.mxu0
    %v2320 = vadd.f32 0.0, %v2319
    %v2321 = vpop.f32.mrf.mxu0
    %2322 = vdwg.mxu0
    %v2323 = vadd.f32 %v2203, %v2317
    %v2324 = vadd.f32 %v2206, %v2320
    %v2325 = vld [vmem:[%s11] sm:$0x1]
    %v2326 = vld [vmem:[%s12] sm:$0x1]
    %v2327 = vadd.f32 %v2323, %v2324
    %v2328 = vrot.slane %v2327, 4
    %v2329 = vadd.f32 %v2327, %v2328
    %v2330 = vrot.slane %v2329, 2
    %v2331 = vadd.f32 %v2329, %v2330
    %v2332 = vrot.slane %v2331, 1
    %v2333 = vadd.f32 %v2331, %v2332
    %v2334 = vmul.f32 %v2323, %v2323
    %v2335 = vmul.f32 %v2324, %v2324
    %v2336 = vadd.f32 %v2334, %v2335
    %v2337 = vrot.slane %v2336, 4
    %v2338 = vadd.f32 %v2336, %v2337
    %v2339 = vrot.slane %v2338, 2
    %v2340 = vadd.f32 %v2338, %v2339
    %v2341 = vrot.slane %v2340, 1
    %v2342 = vadd.f32 %v2340, %v2341
    %v2343 = vsel %vm546, %v2333, %v2342
    %2344 = vmatprep.subr.mxu0 0.0
    %2345 = vmatpush1.msra.mxu0 %v122
    %2346 = vmatprep.subr.mxu0 0.0
    %2347 = vmatpush1.msra.mxu0 %v121
    %2348 = vmatprep.subr.mxu0 0.0
    %2349 = vmatpush1.msra.mxu0 %v120
    %2350 = vmatprep.subr.mxu0 0.0
    %2351 = vmatpush1.msra.mxu0 %v119
    %2352 = vmatprep.subr.mxu0 0.0
    %2353 = vmatpush1.msra.mxu0 %v118
    %2354 = vmatprep.subr.mxu0 0.0
    %2355 = vmatpush1.msra.mxu0 %v117
    %2356 = vmatprep.subr.mxu0 0.0
    %2357 = vmatpush1.msra.mxu0 %v116
    %2358 = vmatprep.subr.mxu0 0.0
    %2359 = vmatpush1.msra.mxu0 %v115
    %2360 = vmatprep.subr.mxu0 0.0
    %2361 = vmatpush1.msra.mxu0 %v114
    %2362 = vmatprep.subr.mxu0 0.0
    %2363 = vmatpush1.msra.mxu0 %v113
    %2364 = vmatprep.subr.mxu0 0.0
    %2365 = vmatpush1.msra.mxu0 %v112
    %2366 = vmatprep.subr.mxu0 0.0
    %2367 = vmatpush1.msra.mxu0 %v111
    %2368 = vmatprep.subr.mxu0 0.0
    %2369 = vmatpush1.msra.mxu0 %v110
    %2370 = vmatprep.subr.mxu0 0.0
    %2371 = vmatpush1.msra.mxu0 %v109
    %2372 = vmatprep.subr.mxu0 0.0
    %2373 = vmatpush1.msra.mxu0 %v108
    %2374 = vmatprep.subr.mxu0 0.0
    %2375 = vmatpush1.msra.mxu0 %v107
    %2376 = vmatprep.subr.mxu0 0.0
    %2377 = vmatpush2.msra.mxu0 0.0
    %2378 = vmatprep.subr.mxu0 0.0
    %2379 = vmatpush2.msra.mxu0 0.0
    %2380 = vmatprep.subr.mxu0 0.0
    %2381 = vmatpush2.msra.mxu0 0.0
    %2382 = vmatprep.subr.mxu0 0.0
    %2383 = vmatpush2.msra.mxu0 0.0
    %2384 = vmatprep.subr.mxu0 0.0
    %2385 = vmatpush2.msra.mxu0 0.0
    %2386 = vmatprep.subr.mxu0 0.0
    %2387 = vmatpush2.msra.mxu0 0.0
    %2388 = vmatprep.subr.mxu0 0.0
    %2389 = vmatpush2.msra.mxu0 0.0
    %2390 = vmatprep.subr.mxu0 0.0
    %2391 = vmatpush2.msra.mxu0 0.0
    %2392 = vmatprep.subr.mxu0 0.0
    %2393 = vmatpush2.msra.mxu0 0.0
    %2394 = vmatprep.subr.mxu0 0.0
    %2395 = vmatpush2.msra.mxu0 0.0
    %2396 = vmatprep.subr.mxu0 0.0
    %2397 = vmatpush2.msra.mxu0 0.0
    %2398 = vmatprep.subr.mxu0 0.0
    %2399 = vmatpush2.msra.mxu0 0.0
    %2400 = vmatprep.subr.mxu0 0.0
    %2401 = vmatpush2.msra.mxu0 0.0
    %2402 = vmatprep.subr.mxu0 0.0
    %2403 = vmatpush2.msra.mxu0 0.0
    %2404 = vmatprep.subr.mxu0 0.0
    %2405 = vmatpush2.msra.mxu0 0.0
    %2406 = vmatprep.subr.mxu0 0.0
    %2407 = vmatpush2.msra.mxu0 0.0
    %2408 = vmatprep.mubr.f32.mxu0 0.0
    %2409 = vmatmul.mubr.f32.gmra.mxu0 %v2343
    %v2410 = vpop.f32.mrf.mxu0
    %v2411 = vadd.f32 0.0, %v2410
    %v2412 = vpop.f32.mrf.mxu0
    %2413 = vdwg.mxu0
    %v2414 = vmul.f32 %v2411, %v618
    %v2415 = vmul.f32 %v2414, %v2414
    %v2417 = vrot.slane %v2415, 7
    %v2419 = vsub.f32 %v2414, %v2417
    %v2420 = vadd.f32 %v2419, 1e-05
    %v2421 = vrsqrt.pop %v2420
    %v2424 = vunpack.c.l.s4 1966171168
    %v2425 = vunpack.c.0.s8 %v2424
    %v2426 = vlaneseq
    %v2427 = vshrl.u32 %v2426, 7
    %v2428 = vsub.s32 %v2425, %v2427
    %v2429 = vrot.slane %v2421, %v2428
    %v2430 = vcombine.high %v2429, %v2429
    %v2432 = vunpack.c.l.s4 1966171168
    %v2433 = vunpack.c.0.s8 %v2432
    %v2434 = vlaneseq
    %v2435 = vshrl.u32 %v2434, 7
    %v2436 = vsub.s32 %v2433, %v2435
    %v2437 = vrot.slane %v2430, %v2436
    %v2439 = vmul.f32 %v2325, %v2437
    %v2440 = vmul.f32 %v2414, %v2439
    %v2441 = vsub.f32 %v2326, %v2440
    %v2443 = vlaneseq
    %v2444 = vshrl.u32 %v2443, 7
    %v2445 = vsub.s32 0, %v2444
    %v2446 = vrot.slane %v2441, %v2445
    %v2448 = vsel %vm546, %v2439, %v2446
    %v2450 = vsel %vm654, %v2448, 0
    %2452 = vmatprep.subr.mxu0 0.0
    %2453 = vmatpush1.msra.mxu0 0.0
    %2454 = vmatprep.subr.mxu0 0.0
    %2455 = vmatpush1.msra.mxu0 0.0
    %2456 = vmatprep.subr.mxu0 0.0
    %2457 = vmatpush1.msra.mxu0 0.0
    %2458 = vmatprep.subr.mxu0 0.0
    %2459 = vmatpush1.msra.mxu0 0.0
    %2460 = vmatprep.subr.mxu0 0.0
    %2461 = vmatpush1.msra.mxu0 0.0
    %2462 = vmatprep.subr.mxu0 0.0
    %2463 = vmatpush1.msra.mxu0 0.0
    %2464 = vmatprep.subr.mxu0 0.0
    %2465 = vmatpush1.msra.mxu0 0.0
    %2466 = vmatprep.subr.mxu0 0.0
    %2467 = vmatpush1.msra.mxu0 0.0
    %2468 = vmatprep.subr.mxu0 0.0
    %2469 = vmatpush1.msra.mxu0 0.0
    %2470 = vmatprep.subr.mxu0 0.0
    %2471 = vmatpush1.msra.mxu0 0.0
    %2472 = vmatprep.subr.mxu0 0.0
    %2473 = vmatpush1.msra.mxu0 0.0
    %2474 = vmatprep.subr.mxu0 0.0
    %2475 = vmatpush1.msra.mxu0 0.0
    %2476 = vmatprep.subr.mxu0 0.0
    %2477 = vmatpush1.msra.mxu0 0.0
    %2478 = vmatprep.subr.mxu0 0.0
    %2479 = vmatpush1.msra.mxu0 0.0
    %2480 = vmatprep.subr.mxu0 0.0
    %2481 = vmatpush1.msra.mxu0 0.0
    %2482 = vmatprep.subr.mxu0 0.0
    %2483 = vmatpush1.msra.mxu0 %v660
    %2484 = vmatprep.subr.mxu0 0.0
    %2485 = vmatpush2.msra.mxu0 0.0
    %2486 = vmatprep.subr.mxu0 0.0
    %2487 = vmatpush2.msra.mxu0 0.0
    %2488 = vmatprep.subr.mxu0 0.0
    %2489 = vmatpush2.msra.mxu0 0.0
    %2490 = vmatprep.subr.mxu0 0.0
    %2491 = vmatpush2.msra.mxu0 0.0
    %2492 = vmatprep.subr.mxu0 0.0
    %2493 = vmatpush2.msra.mxu0 0.0
    %2494 = vmatprep.subr.mxu0 0.0
    %2495 = vmatpush2.msra.mxu0 0.0
    %2496 = vmatprep.subr.mxu0 0.0
    %2497 = vmatpush2.msra.mxu0 0.0
    %2498 = vmatprep.subr.mxu0 0.0
    %2499 = vmatpush2.msra.mxu0 0.0
    %2500 = vmatprep.subr.mxu0 0.0
    %2501 = vmatpush2.msra.mxu0 0.0
    %2502 = vmatprep.subr.mxu0 0.0
    %2503 = vmatpush2.msra.mxu0 0.0
    %2504 = vmatprep.subr.mxu0 0.0
    %2505 = vmatpush2.msra.mxu0 0.0
    %2506 = vmatprep.subr.mxu0 0.0
    %2507 = vmatpush2.msra.mxu0 0.0
    %2508 = vmatprep.subr.mxu0 0.0
    %2509 = vmatpush2.msra.mxu0 0.0
    %2510 = vmatprep.subr.mxu0 0.0
    %2511 = vmatpush2.msra.mxu0 0.0
    %2512 = vmatprep.subr.mxu0 0.0
    %2513 = vmatpush2.msra.mxu0 0.0
    %2514 = vmatprep.subr.mxu0 0.0
    %2515 = vmatpush2.msra.mxu0 0.0
    %2516 = vmatprep.mubr.f32.mxu0 0.0
    %2517 = vmatmul.mubr.f32.gmra.mxu0 %v2450
    %v2518 = vpop.f32.mrf.mxu0
    %v2519 = vadd.f32 0.0, %v2518
    %v2520 = vpop.f32.mrf.mxu0
    %2521 = vdwg.mxu0
    %v2522 = vlaneseq
    %v2523 = vshrl.u32 %v2522, 7
    %v2524 = vsub.s32 0, %v2523
    %v2525 = vrot.slane %v2519, %v2524
    %v2526 = vmul.f32 %v2323, %v2525
    %v2527 = vmul.f32 %v2324, %v2525
    %v2528 = vlaneseq
    %v2529 = vshrl.u32 %v2528, 7
    %v2530 = vsub.s32 1, %v2529
    %v2531 = vrot.slane %v2519, %v2530
    %v2532 = vadd.f32 %v2526, %v2531
    %v2533 = vadd.f32 %v2527, %v2531
    %v2534 = vadd.f32 %v2532, %v1342
    %v2535 = vadd.f32 %v2533, %v1343
    %v2536 = vmax.f32 %v2534, 0.0
    %v2537 = vmax.f32 %v2535, 0.0
    %2538 = vst [vmem:[#allocation11] sm:$0xff] %v2536
    %2539 = vst [vmem:[#allocation11 + $0x8] sm:$0xff] %v2537
    // Predicated region
    $region78: #{tpu_custom_call.1} parent=1 // pred_check
      _
    $region79: #{tpu_custom_call.1} parent=1 // pred_check_branch
      %2541 = sbr.rel (0) target = $region81
    $region80: #{tpu_custom_call.1} parent=1 // pred_region
      %s2543 = ssub.s32 256, 256
      %2544 = vsyncadd [#allocation5], %s2543
      %s2545 = sshll.u32 [#allocation11], 4
      %s2546 = int_to_ptr.vmem [resolvable:$true] %s2545
      %2551 = dma.vmem_to_hbm [thread:$0]  %s2546, 256, %s15, [#allocation5], 128, 128, 8
    $region81: #{tpu_custom_call.1} parent=1 // pred_fallthru
      _
    // Predicated region
    $region82: #{tpu_custom_call.1} parent=1 // pred_check
      _
    $region83: #{tpu_custom_call.1} parent=1 // pred_check_branch
      %2553 = sbr.rel (0) target = $region85
    $region84: #{tpu_custom_call.1} parent=1 // pred_region
      %2554 = dma.done [#allocation5], 256
    $region85: #{tpu_custom_call.1} parent=1 // pred_fallthru
      _
    %2555 = vsyncpa [#allocation4], 1
    %2556 = vsyncpa [#allocation7], 1
    %2557 = vsyncpa [#allocation10], 1
    %2558 = vsyncpa [#allocation5], 1

</llo_original>
